<compile_context>
chip_gen: v7x
topology: tpu7x:2x2x1
jax: 0.10.0
libtpu: 0.0.40
codegen_flags: <defaults>
</compile_context>

<pallas_src>
import jax
import jax.numpy as jnp
from jax.experimental import pallas as pl
from jax.experimental.pallas import tpu as pltpu


def _sem_att_kernel(z_ref, ws_ref, exp_ref, red_ref, a_ref, out_ref):
    # z_ref:   (tile_b, M*N*C)  flattened per-sample views (lane-dense)
    # ws_ref:  (H, N*C, N)      ws[h, n*C+c, n'] = W[h, c] * [n == n']
    # exp_ref: (N, N*C)         exp[n, n'*C+c]   = [n == n'] / H   (head mean folded in)
    # red_ref: (N*C, C)         red[n*C+c, c']   = [c == c']
    # a_ref:   (1,) in SMEM     PReLU slope (torch default 0.25)
    # out_ref: (tile_b, M*C)
    H, NC, N = ws_ref.shape
    M = z_ref.shape[1] // NC
    a = a_ref[0]

    # t[b, n*C+c] = mean_m z[b, m, n, c] -- static, lane-aligned chunk adds; no reshape.
    t = z_ref[:, 0:NC].astype(jnp.float32)
    for m in range(1, M):
        t = t + z_ref[:, m * NC:(m + 1) * NC].astype(jnp.float32)
    t = t * (1.0 / M)                                                   # (tile_b, N*C)

    # Per-head projection (MXU) + PReLU + exact softmax over nodes; sum the heads.
    alpha = None
    for h in range(H):                                                  # H is small & static
        s = jnp.dot(t, ws_ref[h], preferred_element_type=jnp.float32)   # (tile_b, N)
        s = jnp.where(s >= 0, s, a * s)                                 # PReLU
        s = s - jnp.max(s, axis=-1, keepdims=True)
        e = jnp.exp(s)
        beta = e / jnp.sum(e, axis=-1, keepdims=True)                   # exact divide
        alpha = beta if alpha is None else alpha + beta

    # Head mean (1/H folded into exp_ref) + expansion across the C channel lanes.
    alpha_exp = jnp.dot(alpha, exp_ref[...],
                        preferred_element_type=jnp.float32)             # (tile_b, N*C)

    # out[b, m*C+c] = sum_n alpha[b, n] * z[b, m, n, c]
    # Lane-dense multiply on the VPU; the strided sum over nodes goes to the MXU.
    outs = []
    for m in range(M):                                                  # M is small & static
        zm = z_ref[:, m * NC:(m + 1) * NC].astype(jnp.float32)
        outs.append(jnp.dot(zm * alpha_exp, red_ref[...],
                            preferred_element_type=jnp.float32))        # (tile_b, C)
    out_ref[...] = jnp.concatenate(outs, axis=-1).astype(out_ref.dtype)


def _sem_att_call(zf, ws, expand, reduce_n, a, *, rows, tile_b, out_dtype):
    """One pallas_call over rows [0, rows) of zf.  Requires rows % tile_b == 0
    (zf may have more rows than `rows`; the extra rows are simply never read)."""
    MNC = zf.shape[1]
    H, NC, N = ws.shape
    C = NC // N
    M = MNC // NC
    n_tiles = rows // tile_b
    return pl.pallas_call(
        _sem_att_kernel,
        out_shape=jax.ShapeDtypeStruct((rows, M * C), out_dtype),
        grid=(n_tiles,),
        in_specs=[
            pl.BlockSpec((tile_b, MNC), lambda i: (i, 0)),
            pl.BlockSpec((H, NC, N), lambda i: (0, 0, 0)),
            pl.BlockSpec((N, NC), lambda i: (0, 0)),
            pl.BlockSpec((NC, C), lambda i: (0, 0)),
            pl.BlockSpec(memory_space=pltpu.MemorySpace.SMEM),
        ],
        out_specs=pl.BlockSpec((tile_b, M * C), lambda i: (i, 0)),
        compiler_params=pltpu.CompilerParams(
            dimension_semantics=("parallel",),       # batch axis: megacore-shardable
            vmem_limit_bytes=32 * 1024 * 1024,       # ~14 MiB used at tile_b=512
        ),
    )(zf, ws, expand, reduce_n, a)


def semantic_attention_batched(z, W, a, *, tile_b=512):
    """Batched SemanticAttention forward.

    z: (B, M, N, C)  B independent samples (num_views, num_nodes, in_channel)
    W: (H, C)        Linear(in_channel, num_head, bias=False) weight
    a: (1,)          PReLU slope
    returns (B, M, C), dtype of z (f32 or bf16 inputs supported).
    """
    B, M, N, C = z.shape
    H = W.shape[0]
    NC, MNC = N * C, M * N * C
    f32 = jnp.float32

    # Tile size: big (amortizes per-grid-step overhead); second-minor block dim
    # must be a multiple of 8 unless it equals the full batch.
    tile_b = int(min(tile_b, B))
    if tile_b < B:
        tile_b = max(8, (tile_b // 8) * 8)

    # Constant, W-derived matrices (tiny; fetched into VMEM once).
    eye_n = jnp.eye(N, dtype=f32)
    ws = jnp.einsum("nk,hc->hnck", eye_n, W.astype(f32)).reshape(H, NC, N)
    expand = jnp.broadcast_to((eye_n / H)[:, :, None], (N, N, C)).reshape(N, NC)
    reduce_n = jnp.broadcast_to(jnp.eye(C, dtype=f32), (N, C, C)).reshape(NC, C)
    a = jnp.asarray(a, dtype=f32).reshape((1,))

    zf = z.reshape(B, MNC)                 # free collapse of trailing dims (no HBM copy)
    main_rows = (B // tile_b) * tile_b

    parts = []
    if main_rows > 0:
        parts.append(_sem_att_call(zf, ws, expand, reduce_n, a,
                                   rows=main_rows, tile_b=tile_b, out_dtype=z.dtype))
    if main_rows < B:
        # Ragged tail: one tiny extra call on the leftover rows only
        # (no full zero-padded HBM copy of z).
        tail = zf[main_rows:]
        parts.append(_sem_att_call(tail, ws, expand, reduce_n, a,
                                   rows=B - main_rows, tile_b=B - main_rows,
                                   out_dtype=z.dtype))
    out = parts[0] if len(parts) == 1 else jnp.concatenate(parts, axis=0)
    return out.reshape(B, M, C)


def semantic_attention(z, W, a):
    """Single-sample forward matching the PyTorch module: z (M, N, C) -> (M, C)."""
    return semantic_attention_batched(z[None], W, a)[0]


def _reference_single(z, W, a):
    """Literal plain-JAX transcription of the PyTorch forward, for verification."""
    t = z.mean(0)                                                     # (N, C)
    w = t @ W.T                                                       # Linear (no bias)
    w = jnp.where(w >= 0, w, a * w)                                   # PReLU
    beta = jax.nn.softmax(w, axis=0)                                  # (N, H)
    beta = jnp.broadcast_to(beta, (z.shape[0],) + beta.shape)         # (M, N, H)
    beta = jnp.stack(jnp.split(beta, beta.shape[2], axis=2), axis=0)  # (H, M, N, 1)
    out = (beta * z).sum(2)                                           # (H, M, C)
    return out.mean(0)                                                # (M, C)


if __name__ == "__main__":
    key = jax.random.PRNGKey(0)
    # SemanticAttention(in_channel=32, num_head=4); a sample z is
    # (num_views=3, num_nodes=16, in_channel=32).
    M, N, C, H = 3, 16, 32, 4
    kz, kw, kz2 = jax.random.split(key, 3)
    W = jax.random.normal(kw, (H, C), dtype=jnp.float32) / jnp.sqrt(C)
    a = jnp.array([0.25], dtype=jnp.float32)          # torch PReLU default slope

    # 1) Small batch, single tile.
    B = 8
    z = jax.random.normal(kz, (B, M, N, C), dtype=jnp.float32)
    out = jax.block_until_ready(semantic_attention_batched(z, W, a))
    ref = jax.vmap(lambda zz: _reference_single(zz, W, a[0]))(z)
    assert out.shape == (B, M, C)
    assert jnp.allclose(out, ref, rtol=1e-3, atol=1e-4), float(jnp.max(jnp.abs(out - ref)))

    # 2) Multi-tile grid + ragged tail (exercises the no-pad tail path).
    B2 = 20
    z2 = jax.random.normal(kz2, (B2, M, N, C), dtype=jnp.float32)
    out2 = jax.block_until_ready(semantic_attention_batched(z2, W, a, tile_b=8))
    ref2 = jax.vmap(lambda zz: _reference_single(zz, W, a[0]))(z2)
    assert out2.shape == (B2, M, C)
    assert jnp.allclose(out2, ref2, rtol=1e-3, atol=1e-4), float(jnp.max(jnp.abs(out2 - ref2)))

    # 3) bf16 input path (halved HBM bytes for this bandwidth-bound kernel).
    out_bf = jax.block_until_ready(semantic_attention_batched(z.astype(jnp.bfloat16), W, a))
    assert out_bf.dtype == jnp.bfloat16
    assert jnp.allclose(out_bf.astype(jnp.float32), ref, rtol=3e-2, atol=3e-2)

    # 4) Single-sample entry point mirroring the torch forward signature.
    out1 = jax.block_until_ready(semantic_attention(z[0], W, a))
    assert out1.shape == (M, C)
    assert jnp.allclose(out1, ref[0], rtol=1e-3, atol=1e-4)

    print("KERNEL_OK")
</pallas_src>

<mosaic_0001>
module attributes {stable_mosaic.version = 11 : i64} {
  func.func @_sem_att_kernel(%arg0: i32, %arg1: memref<8x1536xf32, #tpu.memory_space<vmem>>, %arg2: memref<4x512x16xf32, #tpu.memory_space<vmem>>, %arg3: memref<16x512xf32, #tpu.memory_space<vmem>>, %arg4: memref<512x32xf32, #tpu.memory_space<vmem>>, %arg5: memref<1xf32, #tpu.memory_space<smem>>, %arg6: memref<8x96xf32, #tpu.memory_space<vmem>>) attributes {dimension_semantics = [#tpu.dimension_semantics<parallel>], iteration_bounds = array<i64: 1>, scalar_prefetch = 0 : i64, scratch_operands = 0 : i64, tpu.core_type = #tpu.core_type<tc>, window_params = [{transform_indices = @transform_0, window_bounds = array<i64: 8, 1536>}, {pipeline_mode = #tpu.pipeline_mode<synchronous>, transform_indices = @transform_1, window_bounds = array<i64: 4, 512, 16>}, {pipeline_mode = #tpu.pipeline_mode<synchronous>, transform_indices = @transform_2, window_bounds = array<i64: 16, 512>}, {pipeline_mode = #tpu.pipeline_mode<synchronous>, transform_indices = @transform_3, window_bounds = array<i64: 512, 32>}, {transform_indices = @transform_4, window_bounds = array<i64: 1>}, {transform_indices = @transform_5, window_bounds = array<i64: 8, 96>}]} {
    %c0 = arith.constant 0 : index
    %0 = memref.load %arg5[%c0] : memref<1xf32, #tpu.memory_space<smem>>
    %c0_0 = arith.constant 0 : index
    %c0_1 = arith.constant 0 : index
    %1 = vector.load %arg1[%c0_0, %c0_1] : memref<8x1536xf32, #tpu.memory_space<vmem>>, vector<8x512xf32>
    %c0_2 = arith.constant 0 : index
    %c512 = arith.constant 512 : index
    %2 = vector.load %arg1[%c0_2, %c512] : memref<8x1536xf32, #tpu.memory_space<vmem>>, vector<8x512xf32>
    %3 = arith.addf %1, %2 : vector<8x512xf32>
    %c0_3 = arith.constant 0 : index
    %c1024 = arith.constant 1024 : index
    %4 = vector.load %arg1[%c0_3, %c1024] : memref<8x1536xf32, #tpu.memory_space<vmem>>, vector<8x512xf32>
    %5 = arith.addf %3, %4 : vector<8x512xf32>
    %cst = arith.constant 0.333333343 : f32
    %6 = vector.broadcast %cst : f32 to vector<8x512xf32>
    %7 = arith.mulf %5, %6 : vector<8x512xf32>
    %c0_4 = arith.constant 0 : index
    %c0_5 = arith.constant 0 : index
    %c0_6 = arith.constant 0 : index
    %8 = vector.load %arg2[%c0_4, %c0_5, %c0_6] : memref<4x512x16xf32, #tpu.memory_space<vmem>>, vector<1x512x16xf32>
    %9 = vector.shape_cast %8 : vector<1x512x16xf32> to vector<512x16xf32>
    %cst_7 = arith.constant dense<0.000000e+00> : vector<8x16xf32>
    %10 = tpu.matmul %7, %9, %cst_7 {dimension_numbers = #tpu.dot_dimension_numbers<[1], [0], [0], [1], [0, 0, 1, 1], [], []>} : vector<8x512xf32>, vector<512x16xf32>, vector<8x16xf32> -> vector<8x16xf32>
    %cst_8 = arith.constant 0.000000e+00 : f32
    %11 = vector.broadcast %cst_8 : f32 to vector<8x16xf32>
    %12 = arith.cmpf oge, %10, %11 : vector<8x16xf32>
    %13 = vector.broadcast %0 : f32 to vector<8x16xf32>
    %14 = arith.mulf %13, %10 : vector<8x16xf32>
    %15 = arith.select %12, %10, %14 : vector<8x16xi1>, vector<8x16xf32>
    %cst_9 = arith.constant dense<0xFF800000> : vector<8xf32>
    %16 = vector.multi_reduction <maximumf>, %15, %cst_9 [1] : vector<8x16xf32> to vector<8xf32>
    %17 = vector.shape_cast %16 : vector<8xf32> to vector<8x1xf32>
    %18 = vector.broadcast %17 : vector<8x1xf32> to vector<8x16xf32>
    %19 = arith.subf %15, %18 : vector<8x16xf32>
    %20 = math.exp %19 : vector<8x16xf32>
    %cst_10 = arith.constant dense<0.000000e+00> : vector<8xf32>
    %21 = vector.multi_reduction <add>, %20, %cst_10 [1] : vector<8x16xf32> to vector<8xf32>
    %22 = vector.shape_cast %21 : vector<8xf32> to vector<8x1xf32>
    %23 = vector.broadcast %22 : vector<8x1xf32> to vector<8x16xf32>
    %24 = arith.divf %20, %23 : vector<8x16xf32>
    %c1 = arith.constant 1 : index
    %c0_11 = arith.constant 0 : index
    %c0_12 = arith.constant 0 : index
    %25 = vector.load %arg2[%c1, %c0_11, %c0_12] : memref<4x512x16xf32, #tpu.memory_space<vmem>>, vector<1x512x16xf32>
    %26 = vector.shape_cast %25 : vector<1x512x16xf32> to vector<512x16xf32>
    %cst_13 = arith.constant dense<0.000000e+00> : vector<8x16xf32>
    %27 = tpu.matmul %7, %26, %cst_13 {dimension_numbers = #tpu.dot_dimension_numbers<[1], [0], [0], [1], [0, 0, 1, 1], [], []>} : vector<8x512xf32>, vector<512x16xf32>, vector<8x16xf32> -> vector<8x16xf32>
    %cst_14 = arith.constant 0.000000e+00 : f32
    %28 = vector.broadcast %cst_14 : f32 to vector<8x16xf32>
    %29 = arith.cmpf oge, %27, %28 : vector<8x16xf32>
    %30 = vector.broadcast %0 : f32 to vector<8x16xf32>
    %31 = arith.mulf %30, %27 : vector<8x16xf32>
    %32 = arith.select %29, %27, %31 : vector<8x16xi1>, vector<8x16xf32>
    %cst_15 = arith.constant dense<0xFF800000> : vector<8xf32>
    %33 = vector.multi_reduction <maximumf>, %32, %cst_15 [1] : vector<8x16xf32> to vector<8xf32>
    %34 = vector.shape_cast %33 : vector<8xf32> to vector<8x1xf32>
    %35 = vector.broadcast %34 : vector<8x1xf32> to vector<8x16xf32>
    %36 = arith.subf %32, %35 : vector<8x16xf32>
    %37 = math.exp %36 : vector<8x16xf32>
    %cst_16 = arith.constant dense<0.000000e+00> : vector<8xf32>
    %38 = vector.multi_reduction <add>, %37, %cst_16 [1] : vector<8x16xf32> to vector<8xf32>
    %39 = vector.shape_cast %38 : vector<8xf32> to vector<8x1xf32>
    %40 = vector.broadcast %39 : vector<8x1xf32> to vector<8x16xf32>
    %41 = arith.divf %37, %40 : vector<8x16xf32>
    %42 = arith.addf %24, %41 : vector<8x16xf32>
    %c2 = arith.constant 2 : index
    %c0_17 = arith.constant 0 : index
    %c0_18 = arith.constant 0 : index
    %43 = vector.load %arg2[%c2, %c0_17, %c0_18] : memref<4x512x16xf32, #tpu.memory_space<vmem>>, vector<1x512x16xf32>
    %44 = vector.shape_cast %43 : vector<1x512x16xf32> to vector<512x16xf32>
    %cst_19 = arith.constant dense<0.000000e+00> : vector<8x16xf32>
    %45 = tpu.matmul %7, %44, %cst_19 {dimension_numbers = #tpu.dot_dimension_numbers<[1], [0], [0], [1], [0, 0, 1, 1], [], []>} : vector<8x512xf32>, vector<512x16xf32>, vector<8x16xf32> -> vector<8x16xf32>
    %cst_20 = arith.constant 0.000000e+00 : f32
    %46 = vector.broadcast %cst_20 : f32 to vector<8x16xf32>
    %47 = arith.cmpf oge, %45, %46 : vector<8x16xf32>
    %48 = vector.broadcast %0 : f32 to vector<8x16xf32>
    %49 = arith.mulf %48, %45 : vector<8x16xf32>
    %50 = arith.select %47, %45, %49 : vector<8x16xi1>, vector<8x16xf32>
    %cst_21 = arith.constant dense<0xFF800000> : vector<8xf32>
    %51 = vector.multi_reduction <maximumf>, %50, %cst_21 [1] : vector<8x16xf32> to vector<8xf32>
    %52 = vector.shape_cast %51 : vector<8xf32> to vector<8x1xf32>
    %53 = vector.broadcast %52 : vector<8x1xf32> to vector<8x16xf32>
    %54 = arith.subf %50, %53 : vector<8x16xf32>
    %55 = math.exp %54 : vector<8x16xf32>
    %cst_22 = arith.constant dense<0.000000e+00> : vector<8xf32>
    %56 = vector.multi_reduction <add>, %55, %cst_22 [1] : vector<8x16xf32> to vector<8xf32>
    %57 = vector.shape_cast %56 : vector<8xf32> to vector<8x1xf32>
    %58 = vector.broadcast %57 : vector<8x1xf32> to vector<8x16xf32>
    %59 = arith.divf %55, %58 : vector<8x16xf32>
    %60 = arith.addf %42, %59 : vector<8x16xf32>
    %c3 = arith.constant 3 : index
    %c0_23 = arith.constant 0 : index
    %c0_24 = arith.constant 0 : index
    %61 = vector.load %arg2[%c3, %c0_23, %c0_24] : memref<4x512x16xf32, #tpu.memory_space<vmem>>, vector<1x512x16xf32>
    %62 = vector.shape_cast %61 : vector<1x512x16xf32> to vector<512x16xf32>
    %cst_25 = arith.constant dense<0.000000e+00> : vector<8x16xf32>
    %63 = tpu.matmul %7, %62, %cst_25 {dimension_numbers = #tpu.dot_dimension_numbers<[1], [0], [0], [1], [0, 0, 1, 1], [], []>} : vector<8x512xf32>, vector<512x16xf32>, vector<8x16xf32> -> vector<8x16xf32>
    %cst_26 = arith.constant 0.000000e+00 : f32
    %64 = vector.broadcast %cst_26 : f32 to vector<8x16xf32>
    %65 = arith.cmpf oge, %63, %64 : vector<8x16xf32>
    %66 = vector.broadcast %0 : f32 to vector<8x16xf32>
    %67 = arith.mulf %66, %63 : vector<8x16xf32>
    %68 = arith.select %65, %63, %67 : vector<8x16xi1>, vector<8x16xf32>
    %cst_27 = arith.constant dense<0xFF800000> : vector<8xf32>
    %69 = vector.multi_reduction <maximumf>, %68, %cst_27 [1] : vector<8x16xf32> to vector<8xf32>
    %70 = vector.shape_cast %69 : vector<8xf32> to vector<8x1xf32>
    %71 = vector.broadcast %70 : vector<8x1xf32> to vector<8x16xf32>
    %72 = arith.subf %68, %71 : vector<8x16xf32>
    %73 = math.exp %72 : vector<8x16xf32>
    %cst_28 = arith.constant dense<0.000000e+00> : vector<8xf32>
    %74 = vector.multi_reduction <add>, %73, %cst_28 [1] : vector<8x16xf32> to vector<8xf32>
    %75 = vector.shape_cast %74 : vector<8xf32> to vector<8x1xf32>
    %76 = vector.broadcast %75 : vector<8x1xf32> to vector<8x16xf32>
    %77 = arith.divf %73, %76 : vector<8x16xf32>
    %78 = arith.addf %60, %77 : vector<8x16xf32>
    %c0_29 = arith.constant 0 : index
    %c0_30 = arith.constant 0 : index
    %79 = vector.load %arg3[%c0_29, %c0_30] : memref<16x512xf32, #tpu.memory_space<vmem>>, vector<16x512xf32>
    %cst_31 = arith.constant dense<0.000000e+00> : vector<8x512xf32>
    %80 = tpu.matmul %78, %79, %cst_31 {dimension_numbers = #tpu.dot_dimension_numbers<[1], [0], [0], [1], [0, 0, 1, 1], [], []>} : vector<8x16xf32>, vector<16x512xf32>, vector<8x512xf32> -> vector<8x512xf32>
    %c0_32 = arith.constant 0 : index
    %c0_33 = arith.constant 0 : index
    %81 = vector.load %arg1[%c0_32, %c0_33] : memref<8x1536xf32, #tpu.memory_space<vmem>>, vector<8x512xf32>
    %82 = arith.mulf %81, %80 : vector<8x512xf32>
    %c0_34 = arith.constant 0 : index
    %c0_35 = arith.constant 0 : index
    %83 = vector.load %arg4[%c0_34, %c0_35] : memref<512x32xf32, #tpu.memory_space<vmem>>, vector<512x32xf32>
    %cst_36 = arith.constant dense<0.000000e+00> : vector<8x32xf32>
    %84 = tpu.matmul %82, %83, %cst_36 {dimension_numbers = #tpu.dot_dimension_numbers<[1], [0], [0], [1], [0, 0, 1, 1], [], []>} : vector<8x512xf32>, vector<512x32xf32>, vector<8x32xf32> -> vector<8x32xf32>
    %c0_37 = arith.constant 0 : index
    %c512_38 = arith.constant 512 : index
    %85 = vector.load %arg1[%c0_37, %c512_38] : memref<8x1536xf32, #tpu.memory_space<vmem>>, vector<8x512xf32>
    %86 = arith.mulf %85, %80 : vector<8x512xf32>
    %c0_39 = arith.constant 0 : index
    %c0_40 = arith.constant 0 : index
    %87 = vector.load %arg4[%c0_39, %c0_40] : memref<512x32xf32, #tpu.memory_space<vmem>>, vector<512x32xf32>
    %cst_41 = arith.constant dense<0.000000e+00> : vector<8x32xf32>
    %88 = tpu.matmul %86, %87, %cst_41 {dimension_numbers = #tpu.dot_dimension_numbers<[1], [0], [0], [1], [0, 0, 1, 1], [], []>} : vector<8x512xf32>, vector<512x32xf32>, vector<8x32xf32> -> vector<8x32xf32>
    %c0_42 = arith.constant 0 : index
    %c1024_43 = arith.constant 1024 : index
    %89 = vector.load %arg1[%c0_42, %c1024_43] : memref<8x1536xf32, #tpu.memory_space<vmem>>, vector<8x512xf32>
    %90 = arith.mulf %89, %80 : vector<8x512xf32>
    %c0_44 = arith.constant 0 : index
    %c0_45 = arith.constant 0 : index
    %91 = vector.load %arg4[%c0_44, %c0_45] : memref<512x32xf32, #tpu.memory_space<vmem>>, vector<512x32xf32>
    %cst_46 = arith.constant dense<0.000000e+00> : vector<8x32xf32>
    %92 = tpu.matmul %90, %91, %cst_46 {dimension_numbers = #tpu.dot_dimension_numbers<[1], [0], [0], [1], [0, 0, 1, 1], [], []>} : vector<8x512xf32>, vector<512x32xf32>, vector<8x32xf32> -> vector<8x32xf32>
    %93 = tpu.concatenate %84, %88, %92 in 1 : vector<8x32xf32>, vector<8x32xf32>, vector<8x32xf32> -> vector<8x96xf32>
    %c0_47 = arith.constant 0 : index
    %c0_48 = arith.constant 0 : index
    %94 = vector.load %arg6[%c0_47, %c0_48] : memref<8x96xf32, #tpu.memory_space<vmem>>, vector<8x96xf32>
    tpu.vector_store %arg6[%c0_47, %c0_48], %93 {strides = array<i32>} : memref<8x96xf32, #tpu.memory_space<vmem>>, vector<8x96xf32>,
    return
  }
  func.func @transform_0(%arg0: i32) -> (i32, i32) {
    %c0_i32 = arith.constant 0 : i32
    %c0_i32_0 = arith.constant 0 : i32
    return %arg0, %c0_i32 : i32, i32
  }
  func.func @transform_1(%arg0: i32) -> (i32, i32, i32) {
    %c0_i32 = arith.constant 0 : i32
    %c0_i32_0 = arith.constant 0 : i32
    %c0_i32_1 = arith.constant 0 : i32
    %c0_i32_2 = arith.constant 0 : i32
    return %c0_i32, %c0_i32_0, %c0_i32_1 : i32, i32, i32
  }
  func.func @transform_2(%arg0: i32) -> (i32, i32) {
    %c0_i32 = arith.constant 0 : i32
    %c0_i32_0 = arith.constant 0 : i32
    %c0_i32_1 = arith.constant 0 : i32
    return %c0_i32, %c0_i32_0 : i32, i32
  }
  func.func @transform_3(%arg0: i32) -> (i32, i32) {
    %c0_i32 = arith.constant 0 : i32
    %c0_i32_0 = arith.constant 0 : i32
    %c0_i32_1 = arith.constant 0 : i32
    return %c0_i32, %c0_i32_0 : i32, i32
  }
  func.func @transform_4(%arg0: i32) -> i32 {
    %c0_i32 = arith.constant 0 : i32
    %c0_i32_0 = arith.constant 0 : i32
    return %c0_i32 : i32
  }
  func.func @transform_5(%arg0: i32) -> (i32, i32) {
    %c0_i32 = arith.constant 0 : i32
    %c0_i32_0 = arith.constant 0 : i32
    return %arg0, %c0_i32 : i32, i32
  }
}

</mosaic_0001>

<llo_original>
// kernel: tpu_custom_call.1
$region0: #{tpu_custom_call.1}
  #allocation0 [shape = 'u32[]', space=smem, size = 0x4, offset = 0x4, fixed_abs, tag = 'smem constant byte address 0x4 - core index']
  #allocation1 [shape = 'u32[144,128]{1,0:T(1,128)}', space=vmem, size = 0x12000, scoped, tag = 'internal scratch']
  #allocation2 [shape = 'f32[1]{0:T(128)S(6)}', space=smem, size = 0x200, scoped, tag = 'scoped memory for tpu_custom_call.1']
  %s0 = inlined_call_operand.vmem [shape: f32[8,1536], index: 0, kind: input, shape index: {}]
  %s1 = inlined_call_operand.vmem [shape: f32[4,512,16], index: 1, kind: input, shape index: {}]
  %s2 = inlined_call_operand.vmem [shape: f32[16,512], index: 2, kind: input, shape index: {}]
  %s3 = inlined_call_operand.vmem [shape: f32[512,32], index: 3, kind: input, shape index: {}]
  %s4 = inlined_call_operand.<no memory space> [shape: f32[1], index: 4, kind: input, shape index: {}]
  %s5 = inlined_call_operand.hbm [shape: f32[8,96], index: 5, kind: output, shape index: {}]
  %s6 = sld [smem:[#allocation0]]
  $region30: #{tpu_custom_call.1} parent=0
    _
  %s8 = ssub.s32 1, %s6
  %s9 = scalar_select 0, %s8, %s6
  %10 = sst [smem:[#allocation2]] %s4
  $region1: #{tpu_custom_call.1} parent=0
    #allocation3 [shape = 'u8[4096]{0}', space=vmem, size = 0x1000, scoped, tag = 'output window, operand 0, single buffered']
    #allocation4 [shape = 's32[1]{0}', space=sflag, size = 0x4, scoped, tag = 'scoped memory for tpu_custom_call.1']
    %11 = vsyncpa [#allocation4], 0
    // Predicated region
    $region2: #{tpu_custom_call.1} parent=1 // pred_check
      _
    $region3: #{tpu_custom_call.1} parent=1 // pred_check_branch
      %13 = sbr.rel (0) target = $region5
    $region4: #{tpu_custom_call.1} parent=1 // pred_region
      _
    $region5: #{tpu_custom_call.1} parent=1 // pred_fallthru
      _
    // Predicated region
    $region6: #{tpu_custom_call.1} parent=1 // pred_check
      _
    $region7: #{tpu_custom_call.1} parent=1 // pred_check_branch
      %15 = sbr.rel (0) target = $region9
    $region8: #{tpu_custom_call.1} parent=1 // pred_region
      _
    $region9: #{tpu_custom_call.1} parent=1 // pred_fallthru
      _
    // Predicated region
    $region10: #{tpu_custom_call.1} parent=1 // pred_check
      _
    $region11: #{tpu_custom_call.1} parent=1 // pred_check_branch
      %17 = sbr.rel (0) target = $region13
    $region12: #{tpu_custom_call.1} parent=1 // pred_region
      _
    $region13: #{tpu_custom_call.1} parent=1 // pred_fallthru
      _
    // Predicated region
    $region14: #{tpu_custom_call.1} parent=1 // pred_check
      _
    $region15: #{tpu_custom_call.1} parent=1 // pred_check_branch
      %19 = sbr.rel (0) target = $region17
    $region16: #{tpu_custom_call.1} parent=1 // pred_region
      _
    $region17: #{tpu_custom_call.1} parent=1 // pred_fallthru
      _
    // Predicated region
    $region18: #{tpu_custom_call.1} parent=1 // pred_check
      _
    $region19: #{tpu_custom_call.1} parent=1 // pred_check_branch
      %21 = sbr.rel (0) target = $region21
    $region20: #{tpu_custom_call.1} parent=1 // pred_region
      _
    $region21: #{tpu_custom_call.1} parent=1 // pred_fallthru
      _
    %s22 = sld [smem:[#allocation2]]
    %v23 = vld [vmem:[%s0] sm:$0xff]
    %v24 = vld [vmem:[%s0 + $0x8] sm:$0xff]
    %v25 = vld [vmem:[%s0 + $0x10] sm:$0xff]
    %v26 = vld [vmem:[%s0 + $0x18] sm:$0xff]
    %v27 = vld [vmem:[%s0 + $0x20] sm:$0xff]
    %v28 = vld [vmem:[%s0 + $0x28] sm:$0xff]
    %v29 = vld [vmem:[%s0 + $0x30] sm:$0xff]
    %v30 = vld [vmem:[%s0 + $0x38] sm:$0xff]
    %v31 = vadd.f32 %v23, %v27
    %v32 = vadd.f32 %v24, %v28
    %v33 = vadd.f32 %v25, %v29
    %v34 = vadd.f32 %v26, %v30
    %v35 = vld [vmem:[%s0 + $0x40] sm:$0xff]
    %v36 = vld [vmem:[%s0 + $0x48] sm:$0xff]
    %v37 = vld [vmem:[%s0 + $0x50] sm:$0xff]
    %v38 = vld [vmem:[%s0 + $0x58] sm:$0xff]
    %v39 = vadd.f32 %v31, %v35
    %v40 = vadd.f32 %v32, %v36
    %v41 = vadd.f32 %v33, %v37
    %v42 = vadd.f32 %v34, %v38
    %v43 = vmul.f32 %v39, 0.33333334
    %v44 = vmul.f32 %v40, 0.33333334
    %v45 = vmul.f32 %v41, 0.33333334
    %v46 = vmul.f32 %v42, 0.33333334
    %v47 = vld [vmem:[%s1] sm:$0xff]
    %v48 = vld [vmem:[%s1 + $0x8] sm:$0xff]
    %v49 = vld [vmem:[%s1 + $0x10] sm:$0xff]
    %v50 = vld [vmem:[%s1 + $0x18] sm:$0xff]
    %v51 = vld [vmem:[%s1 + $0x20] sm:$0xff]
    %v52 = vld [vmem:[%s1 + $0x28] sm:$0xff]
    %v53 = vld [vmem:[%s1 + $0x30] sm:$0xff]
    %v54 = vld [vmem:[%s1 + $0x38] sm:$0xff]
    %v55 = vld [vmem:[%s1 + $0x40] sm:$0xff]
    %v56 = vld [vmem:[%s1 + $0x48] sm:$0xff]
    %v57 = vld [vmem:[%s1 + $0x50] sm:$0xff]
    %v58 = vld [vmem:[%s1 + $0x58] sm:$0xff]
    %v59 = vld [vmem:[%s1 + $0x60] sm:$0xff]
    %v60 = vld [vmem:[%s1 + $0x68] sm:$0xff]
    %v61 = vld [vmem:[%s1 + $0x70] sm:$0xff]
    %v62 = vld [vmem:[%s1 + $0x78] sm:$0xff]
    %v63 = vld [vmem:[%s1 + $0x80] sm:$0xff]
    %v64 = vld [vmem:[%s1 + $0x88] sm:$0xff]
    %v65 = vld [vmem:[%s1 + $0x90] sm:$0xff]
    %v66 = vld [vmem:[%s1 + $0x98] sm:$0xff]
    %v67 = vld [vmem:[%s1 + $0xa0] sm:$0xff]
    %v68 = vld [vmem:[%s1 + $0xa8] sm:$0xff]
    %v69 = vld [vmem:[%s1 + $0xb0] sm:$0xff]
    %v70 = vld [vmem:[%s1 + $0xb8] sm:$0xff]
    %v71 = vld [vmem:[%s1 + $0xc0] sm:$0xff]
    %v72 = vld [vmem:[%s1 + $0xc8] sm:$0xff]
    %v73 = vld [vmem:[%s1 + $0xd0] sm:$0xff]
    %v74 = vld [vmem:[%s1 + $0xd8] sm:$0xff]
    %v75 = vld [vmem:[%s1 + $0xe0] sm:$0xff]
    %v76 = vld [vmem:[%s1 + $0xe8] sm:$0xff]
    %v77 = vld [vmem:[%s1 + $0xf0] sm:$0xff]
    %v78 = vld [vmem:[%s1 + $0xf8] sm:$0xff]
    %v79 = vld [vmem:[%s1 + $0x100] sm:$0xff]
    %v80 = vld [vmem:[%s1 + $0x108] sm:$0xff]
    %v81 = vld [vmem:[%s1 + $0x110] sm:$0xff]
    %v82 = vld [vmem:[%s1 + $0x118] sm:$0xff]
    %v83 = vld [vmem:[%s1 + $0x120] sm:$0xff]
    %v84 = vld [vmem:[%s1 + $0x128] sm:$0xff]
    %v85 = vld [vmem:[%s1 + $0x130] sm:$0xff]
    %v86 = vld [vmem:[%s1 + $0x138] sm:$0xff]
    %v87 = vld [vmem:[%s1 + $0x140] sm:$0xff]
    %v88 = vld [vmem:[%s1 + $0x148] sm:$0xff]
    %v89 = vld [vmem:[%s1 + $0x150] sm:$0xff]
    %v90 = vld [vmem:[%s1 + $0x158] sm:$0xff]
    %v91 = vld [vmem:[%s1 + $0x160] sm:$0xff]
    %v92 = vld [vmem:[%s1 + $0x168] sm:$0xff]
    %v93 = vld [vmem:[%s1 + $0x170] sm:$0xff]
    %v94 = vld [vmem:[%s1 + $0x178] sm:$0xff]
    %v95 = vld [vmem:[%s1 + $0x180] sm:$0xff]
    %v96 = vld [vmem:[%s1 + $0x188] sm:$0xff]
    %v97 = vld [vmem:[%s1 + $0x190] sm:$0xff]
    %v98 = vld [vmem:[%s1 + $0x198] sm:$0xff]
    %v99 = vld [vmem:[%s1 + $0x1a0] sm:$0xff]
    %v100 = vld [vmem:[%s1 + $0x1a8] sm:$0xff]
    %v101 = vld [vmem:[%s1 + $0x1b0] sm:$0xff]
    %v102 = vld [vmem:[%s1 + $0x1b8] sm:$0xff]
    %v103 = vld [vmem:[%s1 + $0x1c0] sm:$0xff]
    %v104 = vld [vmem:[%s1 + $0x1c8] sm:$0xff]
    %v105 = vld [vmem:[%s1 + $0x1d0] sm:$0xff]
    %v106 = vld [vmem:[%s1 + $0x1d8] sm:$0xff]
    %v107 = vld [vmem:[%s1 + $0x1e0] sm:$0xff]
    %v108 = vld [vmem:[%s1 + $0x1e8] sm:$0xff]
    %v109 = vld [vmem:[%s1 + $0x1f0] sm:$0xff]
    %v110 = vld [vmem:[%s1 + $0x1f8] sm:$0xff]
    %111 = vmatprep.subr.mxu0 0.0
    %112 = vmatpush1.msra.mxu0 %v47
    %113 = vmatprep.subr.mxu0 0.0
    %114 = vmatpush1.msra.mxu0 %v48
    %115 = vmatprep.subr.mxu0 0.0
    %116 = vmatpush1.msra.mxu0 %v49
    %117 = vmatprep.subr.mxu0 0.0
    %118 = vmatpush1.msra.mxu0 %v50
    %119 = vmatprep.subr.mxu0 0.0
    %120 = vmatpush1.msra.mxu0 %v51
    %121 = vmatprep.subr.mxu0 0.0
    %122 = vmatpush1.msra.mxu0 %v52
    %123 = vmatprep.subr.mxu0 0.0
    %124 = vmatpush1.msra.mxu0 %v53
    %125 = vmatprep.subr.mxu0 0.0
    %126 = vmatpush1.msra.mxu0 %v54
    %127 = vmatprep.subr.mxu0 0.0
    %128 = vmatpush1.msra.mxu0 %v55
    %129 = vmatprep.subr.mxu0 0.0
    %130 = vmatpush1.msra.mxu0 %v56
    %131 = vmatprep.subr.mxu0 0.0
    %132 = vmatpush1.msra.mxu0 %v57
    %133 = vmatprep.subr.mxu0 0.0
    %134 = vmatpush1.msra.mxu0 %v58
    %135 = vmatprep.subr.mxu0 0.0
    %136 = vmatpush1.msra.mxu0 %v59
    %137 = vmatprep.subr.mxu0 0.0
    %138 = vmatpush1.msra.mxu0 %v60
    %139 = vmatprep.subr.mxu0 0.0
    %140 = vmatpush1.msra.mxu0 %v61
    %141 = vmatprep.subr.mxu0 0.0
    %142 = vmatpush1.msra.mxu0 %v62
    %143 = vmatprep.subr.mxu0 0.0
    %144 = vmatpush1.msra.mxu0 %v63
    %145 = vmatprep.subr.mxu0 0.0
    %146 = vmatpush1.msra.mxu0 %v64
    %147 = vmatprep.subr.mxu0 0.0
    %148 = vmatpush1.msra.mxu0 %v65
    %149 = vmatprep.subr.mxu0 0.0
    %150 = vmatpush1.msra.mxu0 %v66
    %151 = vmatprep.subr.mxu0 0.0
    %152 = vmatpush1.msra.mxu0 %v67
    %153 = vmatprep.subr.mxu0 0.0
    %154 = vmatpush1.msra.mxu0 %v68
    %155 = vmatprep.subr.mxu0 0.0
    %156 = vmatpush1.msra.mxu0 %v69
    %157 = vmatprep.subr.mxu0 0.0
    %158 = vmatpush1.msra.mxu0 %v70
    %159 = vmatprep.subr.mxu0 0.0
    %160 = vmatpush1.msra.mxu0 %v71
    %161 = vmatprep.subr.mxu0 0.0
    %162 = vmatpush1.msra.mxu0 %v72
    %163 = vmatprep.subr.mxu0 0.0
    %164 = vmatpush1.msra.mxu0 %v73
    %165 = vmatprep.subr.mxu0 0.0
    %166 = vmatpush1.msra.mxu0 %v74
    %167 = vmatprep.subr.mxu0 0.0
    %168 = vmatpush1.msra.mxu0 %v75
    %169 = vmatprep.subr.mxu0 0.0
    %170 = vmatpush1.msra.mxu0 %v76
    %171 = vmatprep.subr.mxu0 0.0
    %172 = vmatpush1.msra.mxu0 %v77
    %173 = vmatprep.subr.mxu0 0.0
    %174 = vmatpush1.msra.mxu0 %v78
    %175 = vmatprep.mubr.f32.mxu0 %v44
    %176 = vmatmul.mubr.f32.gmra.mrb[0].mxu0 %v43
    %v177 = vpop.f32.mrb[0].mxu0
    %v178 = vadd.f32 0.0, %v177
    %v179 = vpop.f32.mrb[0].mxu0
    %180 = vdwg.mxu0
    %181 = vmatprep.subr.mxu0 0.0
    %182 = vmatpush1.msra.mxu0 %v79
    %183 = vmatprep.subr.mxu0 0.0
    %184 = vmatpush1.msra.mxu0 %v80
    %185 = vmatprep.subr.mxu0 0.0
    %186 = vmatpush1.msra.mxu0 %v81
    %187 = vmatprep.subr.mxu0 0.0
    %188 = vmatpush1.msra.mxu0 %v82
    %189 = vmatprep.subr.mxu0 0.0
    %190 = vmatpush1.msra.mxu0 %v83
    %191 = vmatprep.subr.mxu0 0.0
    %192 = vmatpush1.msra.mxu0 %v84
    %193 = vmatprep.subr.mxu0 0.0
    %194 = vmatpush1.msra.mxu0 %v85
    %195 = vmatprep.subr.mxu0 0.0
    %196 = vmatpush1.msra.mxu0 %v86
    %197 = vmatprep.subr.mxu0 0.0
    %198 = vmatpush1.msra.mxu0 %v87
    %199 = vmatprep.subr.mxu0 0.0
    %200 = vmatpush1.msra.mxu0 %v88
    %201 = vmatprep.subr.mxu0 0.0
    %202 = vmatpush1.msra.mxu0 %v89
    %203 = vmatprep.subr.mxu0 0.0
    %204 = vmatpush1.msra.mxu0 %v90
    %205 = vmatprep.subr.mxu0 0.0
    %206 = vmatpush1.msra.mxu0 %v91
    %207 = vmatprep.subr.mxu0 0.0
    %208 = vmatpush1.msra.mxu0 %v92
    %209 = vmatprep.subr.mxu0 0.0
    %210 = vmatpush1.msra.mxu0 %v93
    %211 = vmatprep.subr.mxu0 0.0
    %212 = vmatpush1.msra.mxu0 %v94
    %213 = vmatprep.subr.mxu0 0.0
    %214 = vmatpush1.msra.mxu0 %v95
    %215 = vmatprep.subr.mxu0 0.0
    %216 = vmatpush1.msra.mxu0 %v96
    %217 = vmatprep.subr.mxu0 0.0
    %218 = vmatpush1.msra.mxu0 %v97
    %219 = vmatprep.subr.mxu0 0.0
    %220 = vmatpush1.msra.mxu0 %v98
    %221 = vmatprep.subr.mxu0 0.0
    %222 = vmatpush1.msra.mxu0 %v99
    %223 = vmatprep.subr.mxu0 0.0
    %224 = vmatpush1.msra.mxu0 %v100
    %225 = vmatprep.subr.mxu0 0.0
    %226 = vmatpush1.msra.mxu0 %v101
    %227 = vmatprep.subr.mxu0 0.0
    %228 = vmatpush1.msra.mxu0 %v102
    %229 = vmatprep.subr.mxu0 0.0
    %230 = vmatpush1.msra.mxu0 %v103
    %231 = vmatprep.subr.mxu0 0.0
    %232 = vmatpush1.msra.mxu0 %v104
    %233 = vmatprep.subr.mxu0 0.0
    %234 = vmatpush1.msra.mxu0 %v105
    %235 = vmatprep.subr.mxu0 0.0
    %236 = vmatpush1.msra.mxu0 %v106
    %237 = vmatprep.subr.mxu0 0.0
    %238 = vmatpush1.msra.mxu0 %v107
    %239 = vmatprep.subr.mxu0 0.0
    %240 = vmatpush1.msra.mxu0 %v108
    %241 = vmatprep.subr.mxu0 0.0
    %242 = vmatpush1.msra.mxu0 %v109
    %243 = vmatprep.subr.mxu0 0.0
    %244 = vmatpush1.msra.mxu0 %v110
    %245 = vmatprep.mubr.f32.mxu0 %v46
    %246 = vmatmul.mubr.f32.gmra.mrb[0].mxu0 %v45
    %v247 = vpop.f32.mrb[0].mxu0
    %v248 = vadd.f32 %v178, %v247
    %v249 = vpop.f32.mrb[0].mxu0
    %250 = vdwg.mxu0
    %vm251 = vcmp.ge.f32.partialorder %v248, 0.0
    %v252 = vstv %s22
    %v253 = vmul.f32 %v252, %v248
    %v254 = vsel %vm251, %v248, %v253
    %vm255 = vcmask 130048
    %v256 = vsel %vm255, %v254, -inf
    %257 = vmax.xlane.f32.xlu0 %v256
    %v258 = vpop.xlane.xlu0 %257
    %v259 = vsub.f32 %v254, %v258
    %v260 = vmul.f32 %v259, 1.442695
    %v261 = vpow.pop %v260
    %v262 = vsel %vm255, %v261, 0.0
    %263 = vadd.xlane.f32.xlu0 %v262
    %v264 = vpop.xlane.xlu0 %263
    %v265 = vrcp.pop %v264
    %v266 = vmul.f32 %v261, %v265
    %s267 = scalar_lea.vmem %s1, 512
    %v268 = vld [vmem:[%s267] sm:$0xff]
    %v269 = vld [vmem:[%s267 + $0x8] sm:$0xff]
    %v270 = vld [vmem:[%s267 + $0x10] sm:$0xff]
    %v271 = vld [vmem:[%s267 + $0x18] sm:$0xff]
    %v272 = vld [vmem:[%s267 + $0x20] sm:$0xff]
    %v273 = vld [vmem:[%s267 + $0x28] sm:$0xff]
    %v274 = vld [vmem:[%s267 + $0x30] sm:$0xff]
    %v275 = vld [vmem:[%s267 + $0x38] sm:$0xff]
    %v276 = vld [vmem:[%s267 + $0x40] sm:$0xff]
    %v277 = vld [vmem:[%s267 + $0x48] sm:$0xff]
    %v278 = vld [vmem:[%s267 + $0x50] sm:$0xff]
    %v279 = vld [vmem:[%s267 + $0x58] sm:$0xff]
    %v280 = vld [vmem:[%s267 + $0x60] sm:$0xff]
    %v281 = vld [vmem:[%s267 + $0x68] sm:$0xff]
    %v282 = vld [vmem:[%s267 + $0x70] sm:$0xff]
    %v283 = vld [vmem:[%s267 + $0x78] sm:$0xff]
    %v284 = vld [vmem:[%s267 + $0x80] sm:$0xff]
    %v285 = vld [vmem:[%s267 + $0x88] sm:$0xff]
    %v286 = vld [vmem:[%s267 + $0x90] sm:$0xff]
    %v287 = vld [vmem:[%s267 + $0x98] sm:$0xff]
    %v288 = vld [vmem:[%s267 + $0xa0] sm:$0xff]
    %v289 = vld [vmem:[%s267 + $0xa8] sm:$0xff]
    %v290 = vld [vmem:[%s267 + $0xb0] sm:$0xff]
    %v291 = vld [vmem:[%s267 + $0xb8] sm:$0xff]
    %v292 = vld [vmem:[%s267 + $0xc0] sm:$0xff]
    %v293 = vld [vmem:[%s267 + $0xc8] sm:$0xff]
    %v294 = vld [vmem:[%s267 + $0xd0] sm:$0xff]
    %v295 = vld [vmem:[%s267 + $0xd8] sm:$0xff]
    %v296 = vld [vmem:[%s267 + $0xe0] sm:$0xff]
    %v297 = vld [vmem:[%s267 + $0xe8] sm:$0xff]
    %v298 = vld [vmem:[%s267 + $0xf0] sm:$0xff]
    %v299 = vld [vmem:[%s267 + $0xf8] sm:$0xff]
    %v300 = vld [vmem:[%s267 + $0x100] sm:$0xff]
    %v301 = vld [vmem:[%s267 + $0x108] sm:$0xff]
    %v302 = vld [vmem:[%s267 + $0x110] sm:$0xff]
    %v303 = vld [vmem:[%s267 + $0x118] sm:$0xff]
    %v304 = vld [vmem:[%s267 + $0x120] sm:$0xff]
    %v305 = vld [vmem:[%s267 + $0x128] sm:$0xff]
    %v306 = vld [vmem:[%s267 + $0x130] sm:$0xff]
    %v307 = vld [vmem:[%s267 + $0x138] sm:$0xff]
    %v308 = vld [vmem:[%s267 + $0x140] sm:$0xff]
    %v309 = vld [vmem:[%s267 + $0x148] sm:$0xff]
    %v310 = vld [vmem:[%s267 + $0x150] sm:$0xff]
    %v311 = vld [vmem:[%s267 + $0x158] sm:$0xff]
    %v312 = vld [vmem:[%s267 + $0x160] sm:$0xff]
    %v313 = vld [vmem:[%s267 + $0x168] sm:$0xff]
    %v314 = vld [vmem:[%s267 + $0x170] sm:$0xff]
    %v315 = vld [vmem:[%s267 + $0x178] sm:$0xff]
    %v316 = vld [vmem:[%s267 + $0x180] sm:$0xff]
    %v317 = vld [vmem:[%s267 + $0x188] sm:$0xff]
    %v318 = vld [vmem:[%s267 + $0x190] sm:$0xff]
    %v319 = vld [vmem:[%s267 + $0x198] sm:$0xff]
    %v320 = vld [vmem:[%s267 + $0x1a0] sm:$0xff]
    %v321 = vld [vmem:[%s267 + $0x1a8] sm:$0xff]
    %v322 = vld [vmem:[%s267 + $0x1b0] sm:$0xff]
    %v323 = vld [vmem:[%s267 + $0x1b8] sm:$0xff]
    %v324 = vld [vmem:[%s267 + $0x1c0] sm:$0xff]
    %v325 = vld [vmem:[%s267 + $0x1c8] sm:$0xff]
    %v326 = vld [vmem:[%s267 + $0x1d0] sm:$0xff]
    %v327 = vld [vmem:[%s267 + $0x1d8] sm:$0xff]
    %v328 = vld [vmem:[%s267 + $0x1e0] sm:$0xff]
    %v329 = vld [vmem:[%s267 + $0x1e8] sm:$0xff]
    %v330 = vld [vmem:[%s267 + $0x1f0] sm:$0xff]
    %v331 = vld [vmem:[%s267 + $0x1f8] sm:$0xff]
    %332 = vmatprep.subr.mxu0 0.0
    %333 = vmatpush1.msra.mxu0 %v268
    %334 = vmatprep.subr.mxu0 0.0
    %335 = vmatpush1.msra.mxu0 %v269
    %336 = vmatprep.subr.mxu0 0.0
    %337 = vmatpush1.msra.mxu0 %v270
    %338 = vmatprep.subr.mxu0 0.0
    %339 = vmatpush1.msra.mxu0 %v271
    %340 = vmatprep.subr.mxu0 0.0
    %341 = vmatpush1.msra.mxu0 %v272
    %342 = vmatprep.subr.mxu0 0.0
    %343 = vmatpush1.msra.mxu0 %v273
    %344 = vmatprep.subr.mxu0 0.0
    %345 = vmatpush1.msra.mxu0 %v274
    %346 = vmatprep.subr.mxu0 0.0
    %347 = vmatpush1.msra.mxu0 %v275
    %348 = vmatprep.subr.mxu0 0.0
    %349 = vmatpush1.msra.mxu0 %v276
    %350 = vmatprep.subr.mxu0 0.0
    %351 = vmatpush1.msra.mxu0 %v277
    %352 = vmatprep.subr.mxu0 0.0
    %353 = vmatpush1.msra.mxu0 %v278
    %354 = vmatprep.subr.mxu0 0.0
    %355 = vmatpush1.msra.mxu0 %v279
    %356 = vmatprep.subr.mxu0 0.0
    %357 = vmatpush1.msra.mxu0 %v280
    %358 = vmatprep.subr.mxu0 0.0
    %359 = vmatpush1.msra.mxu0 %v281
    %360 = vmatprep.subr.mxu0 0.0
    %361 = vmatpush1.msra.mxu0 %v282
    %362 = vmatprep.subr.mxu0 0.0
    %363 = vmatpush1.msra.mxu0 %v283
    %364 = vmatprep.subr.mxu0 0.0
    %365 = vmatpush1.msra.mxu0 %v284
    %366 = vmatprep.subr.mxu0 0.0
    %367 = vmatpush1.msra.mxu0 %v285
    %368 = vmatprep.subr.mxu0 0.0
    %369 = vmatpush1.msra.mxu0 %v286
    %370 = vmatprep.subr.mxu0 0.0
    %371 = vmatpush1.msra.mxu0 %v287
    %372 = vmatprep.subr.mxu0 0.0
    %373 = vmatpush1.msra.mxu0 %v288
    %374 = vmatprep.subr.mxu0 0.0
    %375 = vmatpush1.msra.mxu0 %v289
    %376 = vmatprep.subr.mxu0 0.0
    %377 = vmatpush1.msra.mxu0 %v290
    %378 = vmatprep.subr.mxu0 0.0
    %379 = vmatpush1.msra.mxu0 %v291
    %380 = vmatprep.subr.mxu0 0.0
    %381 = vmatpush1.msra.mxu0 %v292
    %382 = vmatprep.subr.mxu0 0.0
    %383 = vmatpush1.msra.mxu0 %v293
    %384 = vmatprep.subr.mxu0 0.0
    %385 = vmatpush1.msra.mxu0 %v294
    %386 = vmatprep.subr.mxu0 0.0
    %387 = vmatpush1.msra.mxu0 %v295
    %388 = vmatprep.subr.mxu0 0.0
    %389 = vmatpush1.msra.mxu0 %v296
    %390 = vmatprep.subr.mxu0 0.0
    %391 = vmatpush1.msra.mxu0 %v297
    %392 = vmatprep.subr.mxu0 0.0
    %393 = vmatpush1.msra.mxu0 %v298
    %394 = vmatprep.subr.mxu0 0.0
    %395 = vmatpush1.msra.mxu0 %v299
    %396 = vmatprep.mubr.f32.mxu0 %v44
    %397 = vmatmul.mubr.f32.gmra.mrb[0].mxu0 %v43
    %v398 = vpop.f32.mrb[0].mxu0
    %v399 = vadd.f32 0.0, %v398
    %v400 = vpop.f32.mrb[0].mxu0
    %401 = vdwg.mxu0
    %402 = vmatprep.subr.mxu0 0.0
    %403 = vmatpush1.msra.mxu0 %v300
    %404 = vmatprep.subr.mxu0 0.0
    %405 = vmatpush1.msra.mxu0 %v301
    %406 = vmatprep.subr.mxu0 0.0
    %407 = vmatpush1.msra.mxu0 %v302
    %408 = vmatprep.subr.mxu0 0.0
    %409 = vmatpush1.msra.mxu0 %v303
    %410 = vmatprep.subr.mxu0 0.0
    %411 = vmatpush1.msra.mxu0 %v304
    %412 = vmatprep.subr.mxu0 0.0
    %413 = vmatpush1.msra.mxu0 %v305
    %414 = vmatprep.subr.mxu0 0.0
    %415 = vmatpush1.msra.mxu0 %v306
    %416 = vmatprep.subr.mxu0 0.0
    %417 = vmatpush1.msra.mxu0 %v307
    %418 = vmatprep.subr.mxu0 0.0
    %419 = vmatpush1.msra.mxu0 %v308
    %420 = vmatprep.subr.mxu0 0.0
    %421 = vmatpush1.msra.mxu0 %v309
    %422 = vmatprep.subr.mxu0 0.0
    %423 = vmatpush1.msra.mxu0 %v310
    %424 = vmatprep.subr.mxu0 0.0
    %425 = vmatpush1.msra.mxu0 %v311
    %426 = vmatprep.subr.mxu0 0.0
    %427 = vmatpush1.msra.mxu0 %v312
    %428 = vmatprep.subr.mxu0 0.0
    %429 = vmatpush1.msra.mxu0 %v313
    %430 = vmatprep.subr.mxu0 0.0
    %431 = vmatpush1.msra.mxu0 %v314
    %432 = vmatprep.subr.mxu0 0.0
    %433 = vmatpush1.msra.mxu0 %v315
    %434 = vmatprep.subr.mxu0 0.0
    %435 = vmatpush1.msra.mxu0 %v316
    %436 = vmatprep.subr.mxu0 0.0
    %437 = vmatpush1.msra.mxu0 %v317
    %438 = vmatprep.subr.mxu0 0.0
    %439 = vmatpush1.msra.mxu0 %v318
    %440 = vmatprep.subr.mxu0 0.0
    %441 = vmatpush1.msra.mxu0 %v319
    %442 = vmatprep.subr.mxu0 0.0
    %443 = vmatpush1.msra.mxu0 %v320
    %444 = vmatprep.subr.mxu0 0.0
    %445 = vmatpush1.msra.mxu0 %v321
    %446 = vmatprep.subr.mxu0 0.0
    %447 = vmatpush1.msra.mxu0 %v322
    %448 = vmatprep.subr.mxu0 0.0
    %449 = vmatpush1.msra.mxu0 %v323
    %450 = vmatprep.subr.mxu0 0.0
    %451 = vmatpush1.msra.mxu0 %v324
    %452 = vmatprep.subr.mxu0 0.0
    %453 = vmatpush1.msra.mxu0 %v325
    %454 = vmatprep.subr.mxu0 0.0
    %455 = vmatpush1.msra.mxu0 %v326
    %456 = vmatprep.subr.mxu0 0.0
    %457 = vmatpush1.msra.mxu0 %v327
    %458 = vmatprep.subr.mxu0 0.0
    %459 = vmatpush1.msra.mxu0 %v328
    %460 = vmatprep.subr.mxu0 0.0
    %461 = vmatpush1.msra.mxu0 %v329
    %462 = vmatprep.subr.mxu0 0.0
    %463 = vmatpush1.msra.mxu0 %v330
    %464 = vmatprep.subr.mxu0 0.0
    %465 = vmatpush1.msra.mxu0 %v331
    %466 = vmatprep.mubr.f32.mxu0 %v46
    %467 = vmatmul.mubr.f32.gmra.mrb[0].mxu0 %v45
    %v468 = vpop.f32.mrb[0].mxu0
    %v469 = vadd.f32 %v399, %v468
    %v470 = vpop.f32.mrb[0].mxu0
    %471 = vdwg.mxu0
    %vm472 = vcmp.ge.f32.partialorder %v469, 0.0
    %v473 = vmul.f32 %v252, %v469
    %v474 = vsel %vm472, %v469, %v473
    %v475 = vsel %vm255, %v474, -inf
    %476 = vmax.xlane.f32.xlu0 %v475
    %v477 = vpop.xlane.xlu0 %476
    %v478 = vsub.f32 %v474, %v477
    %v479 = vmul.f32 %v478, 1.442695
    %v480 = vpow.pop %v479
    %v481 = vsel %vm255, %v480, 0.0
    %482 = vadd.xlane.f32.xlu0 %v481
    %v483 = vpop.xlane.xlu0 %482
    %v484 = vrcp.pop %v483
    %v485 = vmul.f32 %v480, %v484
    %v486 = vadd.f32 %v266, %v485
    %s487 = scalar_lea.vmem %s1, 1024
    %v488 = vld [vmem:[%s487] sm:$0xff]
    %v489 = vld [vmem:[%s487 + $0x8] sm:$0xff]
    %v490 = vld [vmem:[%s487 + $0x10] sm:$0xff]
    %v491 = vld [vmem:[%s487 + $0x18] sm:$0xff]
    %v492 = vld [vmem:[%s487 + $0x20] sm:$0xff]
    %v493 = vld [vmem:[%s487 + $0x28] sm:$0xff]
    %v494 = vld [vmem:[%s487 + $0x30] sm:$0xff]
    %v495 = vld [vmem:[%s487 + $0x38] sm:$0xff]
    %v496 = vld [vmem:[%s487 + $0x40] sm:$0xff]
    %v497 = vld [vmem:[%s487 + $0x48] sm:$0xff]
    %v498 = vld [vmem:[%s487 + $0x50] sm:$0xff]
    %v499 = vld [vmem:[%s487 + $0x58] sm:$0xff]
    %v500 = vld [vmem:[%s487 + $0x60] sm:$0xff]
    %v501 = vld [vmem:[%s487 + $0x68] sm:$0xff]
    %v502 = vld [vmem:[%s487 + $0x70] sm:$0xff]
    %v503 = vld [vmem:[%s487 + $0x78] sm:$0xff]
    %v504 = vld [vmem:[%s487 + $0x80] sm:$0xff]
    %v505 = vld [vmem:[%s487 + $0x88] sm:$0xff]
    %v506 = vld [vmem:[%s487 + $0x90] sm:$0xff]
    %v507 = vld [vmem:[%s487 + $0x98] sm:$0xff]
    %v508 = vld [vmem:[%s487 + $0xa0] sm:$0xff]
    %v509 = vld [vmem:[%s487 + $0xa8] sm:$0xff]
    %v510 = vld [vmem:[%s487 + $0xb0] sm:$0xff]
    %v511 = vld [vmem:[%s487 + $0xb8] sm:$0xff]
    %v512 = vld [vmem:[%s487 + $0xc0] sm:$0xff]
    %v513 = vld [vmem:[%s487 + $0xc8] sm:$0xff]
    %v514 = vld [vmem:[%s487 + $0xd0] sm:$0xff]
    %v515 = vld [vmem:[%s487 + $0xd8] sm:$0xff]
    %v516 = vld [vmem:[%s487 + $0xe0] sm:$0xff]
    %v517 = vld [vmem:[%s487 + $0xe8] sm:$0xff]
    %v518 = vld [vmem:[%s487 + $0xf0] sm:$0xff]
    %v519 = vld [vmem:[%s487 + $0xf8] sm:$0xff]
    %v520 = vld [vmem:[%s487 + $0x100] sm:$0xff]
    %v521 = vld [vmem:[%s487 + $0x108] sm:$0xff]
    %v522 = vld [vmem:[%s487 + $0x110] sm:$0xff]
    %v523 = vld [vmem:[%s487 + $0x118] sm:$0xff]
    %v524 = vld [vmem:[%s487 + $0x120] sm:$0xff]
    %v525 = vld [vmem:[%s487 + $0x128] sm:$0xff]
    %v526 = vld [vmem:[%s487 + $0x130] sm:$0xff]
    %v527 = vld [vmem:[%s487 + $0x138] sm:$0xff]
    %v528 = vld [vmem:[%s487 + $0x140] sm:$0xff]
    %v529 = vld [vmem:[%s487 + $0x148] sm:$0xff]
    %v530 = vld [vmem:[%s487 + $0x150] sm:$0xff]
    %v531 = vld [vmem:[%s487 + $0x158] sm:$0xff]
    %v532 = vld [vmem:[%s487 + $0x160] sm:$0xff]
    %v533 = vld [vmem:[%s487 + $0x168] sm:$0xff]
    %v534 = vld [vmem:[%s487 + $0x170] sm:$0xff]
    %v535 = vld [vmem:[%s487 + $0x178] sm:$0xff]
    %v536 = vld [vmem:[%s487 + $0x180] sm:$0xff]
    %v537 = vld [vmem:[%s487 + $0x188] sm:$0xff]
    %v538 = vld [vmem:[%s487 + $0x190] sm:$0xff]
    %v539 = vld [vmem:[%s487 + $0x198] sm:$0xff]
    %v540 = vld [vmem:[%s487 + $0x1a0] sm:$0xff]
    %v541 = vld [vmem:[%s487 + $0x1a8] sm:$0xff]
    %v542 = vld [vmem:[%s487 + $0x1b0] sm:$0xff]
    %v543 = vld [vmem:[%s487 + $0x1b8] sm:$0xff]
    %v544 = vld [vmem:[%s487 + $0x1c0] sm:$0xff]
    %v545 = vld [vmem:[%s487 + $0x1c8] sm:$0xff]
    %v546 = vld [vmem:[%s487 + $0x1d0] sm:$0xff]
    %v547 = vld [vmem:[%s487 + $0x1d8] sm:$0xff]
    %v548 = vld [vmem:[%s487 + $0x1e0] sm:$0xff]
    %v549 = vld [vmem:[%s487 + $0x1e8] sm:$0xff]
    %v550 = vld [vmem:[%s487 + $0x1f0] sm:$0xff]
    %v551 = vld [vmem:[%s487 + $0x1f8] sm:$0xff]
    %552 = vmatprep.subr.mxu0 0.0
    %553 = vmatpush1.msra.mxu0 %v488
    %554 = vmatprep.subr.mxu0 0.0
    %555 = vmatpush1.msra.mxu0 %v489
    %556 = vmatprep.subr.mxu0 0.0
    %557 = vmatpush1.msra.mxu0 %v490
    %558 = vmatprep.subr.mxu0 0.0
    %559 = vmatpush1.msra.mxu0 %v491
    %560 = vmatprep.subr.mxu0 0.0
    %561 = vmatpush1.msra.mxu0 %v492
    %562 = vmatprep.subr.mxu0 0.0
    %563 = vmatpush1.msra.mxu0 %v493
    %564 = vmatprep.subr.mxu0 0.0
    %565 = vmatpush1.msra.mxu0 %v494
    %566 = vmatprep.subr.mxu0 0.0
    %567 = vmatpush1.msra.mxu0 %v495
    %568 = vmatprep.subr.mxu0 0.0
    %569 = vmatpush1.msra.mxu0 %v496
    %570 = vmatprep.subr.mxu0 0.0
    %571 = vmatpush1.msra.mxu0 %v497
    %572 = vmatprep.subr.mxu0 0.0
    %573 = vmatpush1.msra.mxu0 %v498
    %574 = vmatprep.subr.mxu0 0.0
    %575 = vmatpush1.msra.mxu0 %v499
    %576 = vmatprep.subr.mxu0 0.0
    %577 = vmatpush1.msra.mxu0 %v500
    %578 = vmatprep.subr.mxu0 0.0
    %579 = vmatpush1.msra.mxu0 %v501
    %580 = vmatprep.subr.mxu0 0.0
    %581 = vmatpush1.msra.mxu0 %v502
    %582 = vmatprep.subr.mxu0 0.0
    %583 = vmatpush1.msra.mxu0 %v503
    %584 = vmatprep.subr.mxu0 0.0
    %585 = vmatpush1.msra.mxu0 %v504
    %586 = vmatprep.subr.mxu0 0.0
    %587 = vmatpush1.msra.mxu0 %v505
    %588 = vmatprep.subr.mxu0 0.0
    %589 = vmatpush1.msra.mxu0 %v506
    %590 = vmatprep.subr.mxu0 0.0
    %591 = vmatpush1.msra.mxu0 %v507
    %592 = vmatprep.subr.mxu0 0.0
    %593 = vmatpush1.msra.mxu0 %v508
    %594 = vmatprep.subr.mxu0 0.0
    %595 = vmatpush1.msra.mxu0 %v509
    %596 = vmatprep.subr.mxu0 0.0
    %597 = vmatpush1.msra.mxu0 %v510
    %598 = vmatprep.subr.mxu0 0.0
    %599 = vmatpush1.msra.mxu0 %v511
    %600 = vmatprep.subr.mxu0 0.0
    %601 = vmatpush1.msra.mxu0 %v512
    %602 = vmatprep.subr.mxu0 0.0
    %603 = vmatpush1.msra.mxu0 %v513
    %604 = vmatprep.subr.mxu0 0.0
    %605 = vmatpush1.msra.mxu0 %v514
    %606 = vmatprep.subr.mxu0 0.0
    %607 = vmatpush1.msra.mxu0 %v515
    %608 = vmatprep.subr.mxu0 0.0
    %609 = vmatpush1.msra.mxu0 %v516
    %610 = vmatprep.subr.mxu0 0.0
    %611 = vmatpush1.msra.mxu0 %v517
    %612 = vmatprep.subr.mxu0 0.0
    %613 = vmatpush1.msra.mxu0 %v518
    %614 = vmatprep.subr.mxu0 0.0
    %615 = vmatpush1.msra.mxu0 %v519
    %616 = vmatprep.mubr.f32.mxu0 %v44
    %617 = vmatmul.mubr.f32.gmra.mrb[0].mxu0 %v43
    %v618 = vpop.f32.mrb[0].mxu0
    %v619 = vadd.f32 0.0, %v618
    %v620 = vpop.f32.mrb[0].mxu0
    %621 = vdwg.mxu0
    %622 = vmatprep.subr.mxu0 0.0
    %623 = vmatpush1.msra.mxu0 %v520
    %624 = vmatprep.subr.mxu0 0.0
    %625 = vmatpush1.msra.mxu0 %v521
    %626 = vmatprep.subr.mxu0 0.0
    %627 = vmatpush1.msra.mxu0 %v522
    %628 = vmatprep.subr.mxu0 0.0
    %629 = vmatpush1.msra.mxu0 %v523
    %630 = vmatprep.subr.mxu0 0.0
    %631 = vmatpush1.msra.mxu0 %v524
    %632 = vmatprep.subr.mxu0 0.0
    %633 = vmatpush1.msra.mxu0 %v525
    %634 = vmatprep.subr.mxu0 0.0
    %635 = vmatpush1.msra.mxu0 %v526
    %636 = vmatprep.subr.mxu0 0.0
    %637 = vmatpush1.msra.mxu0 %v527
    %638 = vmatprep.subr.mxu0 0.0
    %639 = vmatpush1.msra.mxu0 %v528
    %640 = vmatprep.subr.mxu0 0.0
    %641 = vmatpush1.msra.mxu0 %v529
    %642 = vmatprep.subr.mxu0 0.0
    %643 = vmatpush1.msra.mxu0 %v530
    %644 = vmatprep.subr.mxu0 0.0
    %645 = vmatpush1.msra.mxu0 %v531
    %646 = vmatprep.subr.mxu0 0.0
    %647 = vmatpush1.msra.mxu0 %v532
    %648 = vmatprep.subr.mxu0 0.0
    %649 = vmatpush1.msra.mxu0 %v533
    %650 = vmatprep.subr.mxu0 0.0
    %651 = vmatpush1.msra.mxu0 %v534
    %652 = vmatprep.subr.mxu0 0.0
    %653 = vmatpush1.msra.mxu0 %v535
    %654 = vmatprep.subr.mxu0 0.0
    %655 = vmatpush1.msra.mxu0 %v536
    %656 = vmatprep.subr.mxu0 0.0
    %657 = vmatpush1.msra.mxu0 %v537
    %658 = vmatprep.subr.mxu0 0.0
    %659 = vmatpush1.msra.mxu0 %v538
    %660 = vmatprep.subr.mxu0 0.0
    %661 = vmatpush1.msra.mxu0 %v539
    %662 = vmatprep.subr.mxu0 0.0
    %663 = vmatpush1.msra.mxu0 %v540
    %664 = vmatprep.subr.mxu0 0.0
    %665 = vmatpush1.msra.mxu0 %v541
    %666 = vmatprep.subr.mxu0 0.0
    %667 = vmatpush1.msra.mxu0 %v542
    %668 = vmatprep.subr.mxu0 0.0
    %669 = vmatpush1.msra.mxu0 %v543
    %670 = vmatprep.subr.mxu0 0.0
    %671 = vmatpush1.msra.mxu0 %v544
    %672 = vmatprep.subr.mxu0 0.0
    %673 = vmatpush1.msra.mxu0 %v545
    %674 = vmatprep.subr.mxu0 0.0
    %675 = vmatpush1.msra.mxu0 %v546
    %676 = vmatprep.subr.mxu0 0.0
    %677 = vmatpush1.msra.mxu0 %v547
    %678 = vmatprep.subr.mxu0 0.0
    %679 = vmatpush1.msra.mxu0 %v548
    %680 = vmatprep.subr.mxu0 0.0
    %681 = vmatpush1.msra.mxu0 %v549
    %682 = vmatprep.subr.mxu0 0.0
    %683 = vmatpush1.msra.mxu0 %v550
    %684 = vmatprep.subr.mxu0 0.0
    %685 = vmatpush1.msra.mxu0 %v551
    %686 = vmatprep.mubr.f32.mxu0 %v46
    %687 = vmatmul.mubr.f32.gmra.mrb[0].mxu0 %v45
    %v688 = vpop.f32.mrb[0].mxu0
    %v689 = vadd.f32 %v619, %v688
    %v690 = vpop.f32.mrb[0].mxu0
    %691 = vdwg.mxu0
    %vm692 = vcmp.ge.f32.partialorder %v689, 0.0
    %v693 = vmul.f32 %v252, %v689
    %v694 = vsel %vm692, %v689, %v693
    %v695 = vsel %vm255, %v694, -inf
    %696 = vmax.xlane.f32.xlu0 %v695
    %v697 = vpop.xlane.xlu0 %696
    %v698 = vsub.f32 %v694, %v697
    %v699 = vmul.f32 %v698, 1.442695
    %v700 = vpow.pop %v699
    %v701 = vsel %vm255, %v700, 0.0
    %702 = vadd.xlane.f32.xlu0 %v701
    %v703 = vpop.xlane.xlu0 %702
    %v704 = vrcp.pop %v703
    %v705 = vmul.f32 %v700, %v704
    %v706 = vadd.f32 %v486, %v705
    %s707 = scalar_lea.vmem %s1, 1536
    %v708 = vld [vmem:[%s707] sm:$0xff]
    %v709 = vld [vmem:[%s707 + $0x8] sm:$0xff]
    %v710 = vld [vmem:[%s707 + $0x10] sm:$0xff]
    %v711 = vld [vmem:[%s707 + $0x18] sm:$0xff]
    %v712 = vld [vmem:[%s707 + $0x20] sm:$0xff]
    %v713 = vld [vmem:[%s707 + $0x28] sm:$0xff]
    %v714 = vld [vmem:[%s707 + $0x30] sm:$0xff]
    %v715 = vld [vmem:[%s707 + $0x38] sm:$0xff]
    %v716 = vld [vmem:[%s707 + $0x40] sm:$0xff]
    %v717 = vld [vmem:[%s707 + $0x48] sm:$0xff]
    %v718 = vld [vmem:[%s707 + $0x50] sm:$0xff]
    %v719 = vld [vmem:[%s707 + $0x58] sm:$0xff]
    %v720 = vld [vmem:[%s707 + $0x60] sm:$0xff]
    %v721 = vld [vmem:[%s707 + $0x68] sm:$0xff]
    %v722 = vld [vmem:[%s707 + $0x70] sm:$0xff]
    %v723 = vld [vmem:[%s707 + $0x78] sm:$0xff]
    %v724 = vld [vmem:[%s707 + $0x80] sm:$0xff]
    %v725 = vld [vmem:[%s707 + $0x88] sm:$0xff]
    %v726 = vld [vmem:[%s707 + $0x90] sm:$0xff]
    %v727 = vld [vmem:[%s707 + $0x98] sm:$0xff]
    %v728 = vld [vmem:[%s707 + $0xa0] sm:$0xff]
    %v729 = vld [vmem:[%s707 + $0xa8] sm:$0xff]
    %v730 = vld [vmem:[%s707 + $0xb0] sm:$0xff]
    %v731 = vld [vmem:[%s707 + $0xb8] sm:$0xff]
    %v732 = vld [vmem:[%s707 + $0xc0] sm:$0xff]
    %v733 = vld [vmem:[%s707 + $0xc8] sm:$0xff]
    %v734 = vld [vmem:[%s707 + $0xd0] sm:$0xff]
    %v735 = vld [vmem:[%s707 + $0xd8] sm:$0xff]
    %v736 = vld [vmem:[%s707 + $0xe0] sm:$0xff]
    %v737 = vld [vmem:[%s707 + $0xe8] sm:$0xff]
    %v738 = vld [vmem:[%s707 + $0xf0] sm:$0xff]
    %v739 = vld [vmem:[%s707 + $0xf8] sm:$0xff]
    %v740 = vld [vmem:[%s707 + $0x100] sm:$0xff]
    %v741 = vld [vmem:[%s707 + $0x108] sm:$0xff]
    %v742 = vld [vmem:[%s707 + $0x110] sm:$0xff]
    %v743 = vld [vmem:[%s707 + $0x118] sm:$0xff]
    %v744 = vld [vmem:[%s707 + $0x120] sm:$0xff]
    %v745 = vld [vmem:[%s707 + $0x128] sm:$0xff]
    %v746 = vld [vmem:[%s707 + $0x130] sm:$0xff]
    %v747 = vld [vmem:[%s707 + $0x138] sm:$0xff]
    %v748 = vld [vmem:[%s707 + $0x140] sm:$0xff]
    %v749 = vld [vmem:[%s707 + $0x148] sm:$0xff]
    %v750 = vld [vmem:[%s707 + $0x150] sm:$0xff]
    %v751 = vld [vmem:[%s707 + $0x158] sm:$0xff]
    %v752 = vld [vmem:[%s707 + $0x160] sm:$0xff]
    %v753 = vld [vmem:[%s707 + $0x168] sm:$0xff]
    %v754 = vld [vmem:[%s707 + $0x170] sm:$0xff]
    %v755 = vld [vmem:[%s707 + $0x178] sm:$0xff]
    %v756 = vld [vmem:[%s707 + $0x180] sm:$0xff]
    %v757 = vld [vmem:[%s707 + $0x188] sm:$0xff]
    %v758 = vld [vmem:[%s707 + $0x190] sm:$0xff]
    %v759 = vld [vmem:[%s707 + $0x198] sm:$0xff]
    %v760 = vld [vmem:[%s707 + $0x1a0] sm:$0xff]
    %v761 = vld [vmem:[%s707 + $0x1a8] sm:$0xff]
    %v762 = vld [vmem:[%s707 + $0x1b0] sm:$0xff]
    %v763 = vld [vmem:[%s707 + $0x1b8] sm:$0xff]
    %v764 = vld [vmem:[%s707 + $0x1c0] sm:$0xff]
    %v765 = vld [vmem:[%s707 + $0x1c8] sm:$0xff]
    %v766 = vld [vmem:[%s707 + $0x1d0] sm:$0xff]
    %v767 = vld [vmem:[%s707 + $0x1d8] sm:$0xff]
    %v768 = vld [vmem:[%s707 + $0x1e0] sm:$0xff]
    %v769 = vld [vmem:[%s707 + $0x1e8] sm:$0xff]
    %v770 = vld [vmem:[%s707 + $0x1f0] sm:$0xff]
    %v771 = vld [vmem:[%s707 + $0x1f8] sm:$0xff]
    %772 = vmatprep.subr.mxu0 0.0
    %773 = vmatpush1.msra.mxu0 %v708
    %774 = vmatprep.subr.mxu0 0.0
    %775 = vmatpush1.msra.mxu0 %v709
    %776 = vmatprep.subr.mxu0 0.0
    %777 = vmatpush1.msra.mxu0 %v710
    %778 = vmatprep.subr.mxu0 0.0
    %779 = vmatpush1.msra.mxu0 %v711
    %780 = vmatprep.subr.mxu0 0.0
    %781 = vmatpush1.msra.mxu0 %v712
    %782 = vmatprep.subr.mxu0 0.0
    %783 = vmatpush1.msra.mxu0 %v713
    %784 = vmatprep.subr.mxu0 0.0
    %785 = vmatpush1.msra.mxu0 %v714
    %786 = vmatprep.subr.mxu0 0.0
    %787 = vmatpush1.msra.mxu0 %v715
    %788 = vmatprep.subr.mxu0 0.0
    %789 = vmatpush1.msra.mxu0 %v716
    %790 = vmatprep.subr.mxu0 0.0
    %791 = vmatpush1.msra.mxu0 %v717
    %792 = vmatprep.subr.mxu0 0.0
    %793 = vmatpush1.msra.mxu0 %v718
    %794 = vmatprep.subr.mxu0 0.0
    %795 = vmatpush1.msra.mxu0 %v719
    %796 = vmatprep.subr.mxu0 0.0
    %797 = vmatpush1.msra.mxu0 %v720
    %798 = vmatprep.subr.mxu0 0.0
    %799 = vmatpush1.msra.mxu0 %v721
    %800 = vmatprep.subr.mxu0 0.0
    %801 = vmatpush1.msra.mxu0 %v722
    %802 = vmatprep.subr.mxu0 0.0
    %803 = vmatpush1.msra.mxu0 %v723
    %804 = vmatprep.subr.mxu0 0.0
    %805 = vmatpush1.msra.mxu0 %v724
    %806 = vmatprep.subr.mxu0 0.0
    %807 = vmatpush1.msra.mxu0 %v725
    %808 = vmatprep.subr.mxu0 0.0
    %809 = vmatpush1.msra.mxu0 %v726
    %810 = vmatprep.subr.mxu0 0.0
    %811 = vmatpush1.msra.mxu0 %v727
    %812 = vmatprep.subr.mxu0 0.0
    %813 = vmatpush1.msra.mxu0 %v728
    %814 = vmatprep.subr.mxu0 0.0
    %815 = vmatpush1.msra.mxu0 %v729
    %816 = vmatprep.subr.mxu0 0.0
    %817 = vmatpush1.msra.mxu0 %v730
    %818 = vmatprep.subr.mxu0 0.0
    %819 = vmatpush1.msra.mxu0 %v731
    %820 = vmatprep.subr.mxu0 0.0
    %821 = vmatpush1.msra.mxu0 %v732
    %822 = vmatprep.subr.mxu0 0.0
    %823 = vmatpush1.msra.mxu0 %v733
    %824 = vmatprep.subr.mxu0 0.0
    %825 = vmatpush1.msra.mxu0 %v734
    %826 = vmatprep.subr.mxu0 0.0
    %827 = vmatpush1.msra.mxu0 %v735
    %828 = vmatprep.subr.mxu0 0.0
    %829 = vmatpush1.msra.mxu0 %v736
    %830 = vmatprep.subr.mxu0 0.0
    %831 = vmatpush1.msra.mxu0 %v737
    %832 = vmatprep.subr.mxu0 0.0
    %833 = vmatpush1.msra.mxu0 %v738
    %834 = vmatprep.subr.mxu0 0.0
    %835 = vmatpush1.msra.mxu0 %v739
    %836 = vmatprep.mubr.f32.mxu0 %v44
    %837 = vmatmul.mubr.f32.gmra.mrb[0].mxu0 %v43
    %v838 = vpop.f32.mrb[0].mxu0
    %v839 = vadd.f32 0.0, %v838
    %v840 = vpop.f32.mrb[0].mxu0
    %841 = vdwg.mxu0
    %842 = vmatprep.subr.mxu0 0.0
    %843 = vmatpush1.msra.mxu0 %v740
    %844 = vmatprep.subr.mxu0 0.0
    %845 = vmatpush1.msra.mxu0 %v741
    %846 = vmatprep.subr.mxu0 0.0
    %847 = vmatpush1.msra.mxu0 %v742
    %848 = vmatprep.subr.mxu0 0.0
    %849 = vmatpush1.msra.mxu0 %v743
    %850 = vmatprep.subr.mxu0 0.0
    %851 = vmatpush1.msra.mxu0 %v744
    %852 = vmatprep.subr.mxu0 0.0
    %853 = vmatpush1.msra.mxu0 %v745
    %854 = vmatprep.subr.mxu0 0.0
    %855 = vmatpush1.msra.mxu0 %v746
    %856 = vmatprep.subr.mxu0 0.0
    %857 = vmatpush1.msra.mxu0 %v747
    %858 = vmatprep.subr.mxu0 0.0
    %859 = vmatpush1.msra.mxu0 %v748
    %860 = vmatprep.subr.mxu0 0.0
    %861 = vmatpush1.msra.mxu0 %v749
    %862 = vmatprep.subr.mxu0 0.0
    %863 = vmatpush1.msra.mxu0 %v750
    %864 = vmatprep.subr.mxu0 0.0
    %865 = vmatpush1.msra.mxu0 %v751
    %866 = vmatprep.subr.mxu0 0.0
    %867 = vmatpush1.msra.mxu0 %v752
    %868 = vmatprep.subr.mxu0 0.0
    %869 = vmatpush1.msra.mxu0 %v753
    %870 = vmatprep.subr.mxu0 0.0
    %871 = vmatpush1.msra.mxu0 %v754
    %872 = vmatprep.subr.mxu0 0.0
    %873 = vmatpush1.msra.mxu0 %v755
    %874 = vmatprep.subr.mxu0 0.0
    %875 = vmatpush1.msra.mxu0 %v756
    %876 = vmatprep.subr.mxu0 0.0
    %877 = vmatpush1.msra.mxu0 %v757
    %878 = vmatprep.subr.mxu0 0.0
    %879 = vmatpush1.msra.mxu0 %v758
    %880 = vmatprep.subr.mxu0 0.0
    %881 = vmatpush1.msra.mxu0 %v759
    %882 = vmatprep.subr.mxu0 0.0
    %883 = vmatpush1.msra.mxu0 %v760
    %884 = vmatprep.subr.mxu0 0.0
    %885 = vmatpush1.msra.mxu0 %v761
    %886 = vmatprep.subr.mxu0 0.0
    %887 = vmatpush1.msra.mxu0 %v762
    %888 = vmatprep.subr.mxu0 0.0
    %889 = vmatpush1.msra.mxu0 %v763
    %890 = vmatprep.subr.mxu0 0.0
    %891 = vmatpush1.msra.mxu0 %v764
    %892 = vmatprep.subr.mxu0 0.0
    %893 = vmatpush1.msra.mxu0 %v765
    %894 = vmatprep.subr.mxu0 0.0
    %895 = vmatpush1.msra.mxu0 %v766
    %896 = vmatprep.subr.mxu0 0.0
    %897 = vmatpush1.msra.mxu0 %v767
    %898 = vmatprep.subr.mxu0 0.0
    %899 = vmatpush1.msra.mxu0 %v768
    %900 = vmatprep.subr.mxu0 0.0
    %901 = vmatpush1.msra.mxu0 %v769
    %902 = vmatprep.subr.mxu0 0.0
    %903 = vmatpush1.msra.mxu0 %v770
    %904 = vmatprep.subr.mxu0 0.0
    %905 = vmatpush1.msra.mxu0 %v771
    %906 = vmatprep.mubr.f32.mxu0 %v46
    %907 = vmatmul.mubr.f32.gmra.mrb[0].mxu0 %v45
    %v908 = vpop.f32.mrb[0].mxu0
    %v909 = vadd.f32 %v839, %v908
    %v910 = vpop.f32.mrb[0].mxu0
    %911 = vdwg.mxu0
    %vm912 = vcmp.ge.f32.partialorder %v909, 0.0
    %v913 = vmul.f32 %v252, %v909
    %v914 = vsel %vm912, %v909, %v913
    %v915 = vsel %vm255, %v914, -inf
    %916 = vmax.xlane.f32.xlu0 %v915
    %v917 = vpop.xlane.xlu0 %916
    %v918 = vsub.f32 %v914, %v917
    %v919 = vmul.f32 %v918, 1.442695
    %v920 = vpow.pop %v919
    %v921 = vsel %vm255, %v920, 0.0
    %922 = vadd.xlane.f32.xlu0 %v921
    %v923 = vpop.xlane.xlu0 %922
    %v924 = vrcp.pop %v923
    %v925 = vmul.f32 %v920, %v924
    %v926 = vadd.f32 %v706, %v925
    %v927 = vld [vmem:[%s2] sm:$0xff]
    %v928 = vld [vmem:[%s2 + $0x8] sm:$0xff]
    %v929 = vld [vmem:[%s2 + $0x10] sm:$0xff]
    %v930 = vld [vmem:[%s2 + $0x18] sm:$0xff]
    %v931 = vld [vmem:[%s2 + $0x20] sm:$0xff]
    %v932 = vld [vmem:[%s2 + $0x28] sm:$0xff]
    %v933 = vld [vmem:[%s2 + $0x30] sm:$0xff]
    %v934 = vld [vmem:[%s2 + $0x38] sm:$0xff]
    %v936 = vsel %vm255, %v926, 0
    %938 = vmatprep.subr.mxu0 %v928
    %939 = vmatpush1.msra.mxu0 %v927
    %940 = vmatprep.subr.mxu0 %v932
    %941 = vmatpush1.msra.mxu0 %v931
    %942 = vmatprep.subr.mxu0 0.0
    %943 = vmatpush1.msra.mxu0 0.0
    %944 = vmatprep.subr.mxu0 0.0
    %945 = vmatpush1.msra.mxu0 0.0
    %946 = vmatprep.subr.mxu0 0.0
    %947 = vmatpush1.msra.mxu0 0.0
    %948 = vmatprep.subr.mxu0 0.0
    %949 = vmatpush1.msra.mxu0 0.0
    %950 = vmatprep.subr.mxu0 0.0
    %951 = vmatpush1.msra.mxu0 0.0
    %952 = vmatprep.subr.mxu0 0.0
    %953 = vmatpush1.msra.mxu0 0.0
    %954 = vmatprep.subr.mxu0 0.0
    %955 = vmatpush1.msra.mxu0 0.0
    %956 = vmatprep.subr.mxu0 0.0
    %957 = vmatpush1.msra.mxu0 0.0
    %958 = vmatprep.subr.mxu0 0.0
    %959 = vmatpush1.msra.mxu0 0.0
    %960 = vmatprep.subr.mxu0 0.0
    %961 = vmatpush1.msra.mxu0 0.0
    %962 = vmatprep.subr.mxu0 0.0
    %963 = vmatpush1.msra.mxu0 0.0
    %964 = vmatprep.subr.mxu0 0.0
    %965 = vmatpush1.msra.mxu0 0.0
    %966 = vmatprep.subr.mxu0 0.0
    %967 = vmatpush1.msra.mxu0 0.0
    %968 = vmatprep.subr.mxu0 0.0
    %969 = vmatpush1.msra.mxu0 0.0
    %970 = vmatprep.subr.mxu0 0.0
    %971 = vmatpush1.msra.mxu0 0.0
    %972 = vmatprep.subr.mxu0 0.0
    %973 = vmatpush1.msra.mxu0 0.0
    %974 = vmatprep.subr.mxu0 0.0
    %975 = vmatpush1.msra.mxu0 0.0
    %976 = vmatprep.subr.mxu0 0.0
    %977 = vmatpush1.msra.mxu0 0.0
    %978 = vmatprep.subr.mxu0 0.0
    %979 = vmatpush1.msra.mxu0 0.0
    %980 = vmatprep.subr.mxu0 0.0
    %981 = vmatpush1.msra.mxu0 0.0
    %982 = vmatprep.subr.mxu0 0.0
    %983 = vmatpush1.msra.mxu0 0.0
    %984 = vmatprep.subr.mxu0 0.0
    %985 = vmatpush1.msra.mxu0 0.0
    %986 = vmatprep.subr.mxu0 0.0
    %987 = vmatpush1.msra.mxu0 0.0
    %988 = vmatprep.subr.mxu0 0.0
    %989 = vmatpush1.msra.mxu0 0.0
    %990 = vmatprep.subr.mxu0 0.0
    %991 = vmatpush1.msra.mxu0 0.0
    %992 = vmatprep.subr.mxu0 0.0
    %993 = vmatpush1.msra.mxu0 0.0
    %994 = vmatprep.subr.mxu0 0.0
    %995 = vmatpush1.msra.mxu0 0.0
    %996 = vmatprep.subr.mxu0 0.0
    %997 = vmatpush1.msra.mxu0 0.0
    %998 = vmatprep.subr.mxu0 0.0
    %999 = vmatpush1.msra.mxu0 0.0
    %1000 = vmatprep.subr.mxu0 0.0
    %1001 = vmatpush1.msra.mxu0 0.0
    %1002 = vmatprep.mubr.f32.mxu0 0.0
    %1003 = vmatmul.mubr.f32.gmra.mrb[0].mxu0 %v936
    %v1004 = vpop.f32.mrb[0].mxu0
    %v1005 = vadd.f32 0.0, %v1004
    %v1006 = vpop.f32.mrb[0].mxu0
    %v1007 = vadd.f32 0.0, %v1006
    %1008 = vdwg.mxu0
    %1009 = vmatprep.subr.mxu0 %v930
    %1010 = vmatpush1.msra.mxu0 %v929
    %1011 = vmatprep.subr.mxu0 %v934
    %1012 = vmatpush1.msra.mxu0 %v933
    %1013 = vmatprep.subr.mxu0 0.0
    %1014 = vmatpush1.msra.mxu0 0.0
    %1015 = vmatprep.subr.mxu0 0.0
    %1016 = vmatpush1.msra.mxu0 0.0
    %1017 = vmatprep.subr.mxu0 0.0
    %1018 = vmatpush1.msra.mxu0 0.0
    %1019 = vmatprep.subr.mxu0 0.0
    %1020 = vmatpush1.msra.mxu0 0.0
    %1021 = vmatprep.subr.mxu0 0.0
    %1022 = vmatpush1.msra.mxu0 0.0
    %1023 = vmatprep.subr.mxu0 0.0
    %1024 = vmatpush1.msra.mxu0 0.0
    %1025 = vmatprep.subr.mxu0 0.0
    %1026 = vmatpush1.msra.mxu0 0.0
    %1027 = vmatprep.subr.mxu0 0.0
    %1028 = vmatpush1.msra.mxu0 0.0
    %1029 = vmatprep.subr.mxu0 0.0
    %1030 = vmatpush1.msra.mxu0 0.0
    %1031 = vmatprep.subr.mxu0 0.0
    %1032 = vmatpush1.msra.mxu0 0.0
    %1033 = vmatprep.subr.mxu0 0.0
    %1034 = vmatpush1.msra.mxu0 0.0
    %1035 = vmatprep.subr.mxu0 0.0
    %1036 = vmatpush1.msra.mxu0 0.0
    %1037 = vmatprep.subr.mxu0 0.0
    %1038 = vmatpush1.msra.mxu0 0.0
    %1039 = vmatprep.subr.mxu0 0.0
    %1040 = vmatpush1.msra.mxu0 0.0
    %1041 = vmatprep.subr.mxu0 0.0
    %1042 = vmatpush1.msra.mxu0 0.0
    %1043 = vmatprep.subr.mxu0 0.0
    %1044 = vmatpush1.msra.mxu0 0.0
    %1045 = vmatprep.subr.mxu0 0.0
    %1046 = vmatpush1.msra.mxu0 0.0
    %1047 = vmatprep.subr.mxu0 0.0
    %1048 = vmatpush1.msra.mxu0 0.0
    %1049 = vmatprep.subr.mxu0 0.0
    %1050 = vmatpush1.msra.mxu0 0.0
    %1051 = vmatprep.subr.mxu0 0.0
    %1052 = vmatpush1.msra.mxu0 0.0
    %1053 = vmatprep.subr.mxu0 0.0
    %1054 = vmatpush1.msra.mxu0 0.0
    %1055 = vmatprep.subr.mxu0 0.0
    %1056 = vmatpush1.msra.mxu0 0.0
    %1057 = vmatprep.subr.mxu0 0.0
    %1058 = vmatpush1.msra.mxu0 0.0
    %1059 = vmatprep.subr.mxu0 0.0
    %1060 = vmatpush1.msra.mxu0 0.0
    %1061 = vmatprep.subr.mxu0 0.0
    %1062 = vmatpush1.msra.mxu0 0.0
    %1063 = vmatprep.subr.mxu0 0.0
    %1064 = vmatpush1.msra.mxu0 0.0
    %1065 = vmatprep.subr.mxu0 0.0
    %1066 = vmatpush1.msra.mxu0 0.0
    %1067 = vmatprep.subr.mxu0 0.0
    %1068 = vmatpush1.msra.mxu0 0.0
    %1069 = vmatprep.subr.mxu0 0.0
    %1070 = vmatpush1.msra.mxu0 0.0
    %1071 = vmatprep.subr.mxu0 0.0
    %1072 = vmatpush1.msra.mxu0 0.0
    %1073 = vmatprep.mubr.f32.mxu0 0.0
    %1074 = vmatmul.mubr.f32.gmra.mrb[0].mxu0 %v936
    %v1075 = vpop.f32.mrb[0].mxu0
    %v1076 = vadd.f32 0.0, %v1075
    %v1077 = vpop.f32.mrb[0].mxu0
    %v1078 = vadd.f32 0.0, %v1077
    %1079 = vdwg.mxu0
    %v1080 = vmul.f32 %v23, %v1005
    %v1081 = vmul.f32 %v24, %v1007
    %v1082 = vmul.f32 %v25, %v1076
    %v1083 = vmul.f32 %v26, %v1078
    %v1084 = vld [vmem:[%s3] sm:$0xff]
    %v1085 = vld [vmem:[%s3 + $0x8] sm:$0xff]
    %v1086 = vld [vmem:[%s3 + $0x10] sm:$0xff]
    %v1087 = vld [vmem:[%s3 + $0x18] sm:$0xff]
    %v1088 = vld [vmem:[%s3 + $0x20] sm:$0xff]
    %v1089 = vld [vmem:[%s3 + $0x28] sm:$0xff]
    %v1090 = vld [vmem:[%s3 + $0x30] sm:$0xff]
    %v1091 = vld [vmem:[%s3 + $0x38] sm:$0xff]
    %v1092 = vld [vmem:[%s3 + $0x40] sm:$0xff]
    %v1093 = vld [vmem:[%s3 + $0x48] sm:$0xff]
    %v1094 = vld [vmem:[%s3 + $0x50] sm:$0xff]
    %v1095 = vld [vmem:[%s3 + $0x58] sm:$0xff]
    %v1096 = vld [vmem:[%s3 + $0x60] sm:$0xff]
    %v1097 = vld [vmem:[%s3 + $0x68] sm:$0xff]
    %v1098 = vld [vmem:[%s3 + $0x70] sm:$0xff]
    %v1099 = vld [vmem:[%s3 + $0x78] sm:$0xff]
    %v1100 = vld [vmem:[%s3 + $0x80] sm:$0xff]
    %v1101 = vld [vmem:[%s3 + $0x88] sm:$0xff]
    %v1102 = vld [vmem:[%s3 + $0x90] sm:$0xff]
    %v1103 = vld [vmem:[%s3 + $0x98] sm:$0xff]
    %v1104 = vld [vmem:[%s3 + $0xa0] sm:$0xff]
    %v1105 = vld [vmem:[%s3 + $0xa8] sm:$0xff]
    %v1106 = vld [vmem:[%s3 + $0xb0] sm:$0xff]
    %v1107 = vld [vmem:[%s3 + $0xb8] sm:$0xff]
    %v1108 = vld [vmem:[%s3 + $0xc0] sm:$0xff]
    %v1109 = vld [vmem:[%s3 + $0xc8] sm:$0xff]
    %v1110 = vld [vmem:[%s3 + $0xd0] sm:$0xff]
    %v1111 = vld [vmem:[%s3 + $0xd8] sm:$0xff]
    %v1112 = vld [vmem:[%s3 + $0xe0] sm:$0xff]
    %v1113 = vld [vmem:[%s3 + $0xe8] sm:$0xff]
    %v1114 = vld [vmem:[%s3 + $0xf0] sm:$0xff]
    %v1115 = vld [vmem:[%s3 + $0xf8] sm:$0xff]
    %v1116 = vld [vmem:[%s3 + $0x100] sm:$0xff]
    %v1117 = vld [vmem:[%s3 + $0x108] sm:$0xff]
    %v1118 = vld [vmem:[%s3 + $0x110] sm:$0xff]
    %v1119 = vld [vmem:[%s3 + $0x118] sm:$0xff]
    %v1120 = vld [vmem:[%s3 + $0x120] sm:$0xff]
    %v1121 = vld [vmem:[%s3 + $0x128] sm:$0xff]
    %v1122 = vld [vmem:[%s3 + $0x130] sm:$0xff]
    %v1123 = vld [vmem:[%s3 + $0x138] sm:$0xff]
    %v1124 = vld [vmem:[%s3 + $0x140] sm:$0xff]
    %v1125 = vld [vmem:[%s3 + $0x148] sm:$0xff]
    %v1126 = vld [vmem:[%s3 + $0x150] sm:$0xff]
    %v1127 = vld [vmem:[%s3 + $0x158] sm:$0xff]
    %v1128 = vld [vmem:[%s3 + $0x160] sm:$0xff]
    %v1129 = vld [vmem:[%s3 + $0x168] sm:$0xff]
    %v1130 = vld [vmem:[%s3 + $0x170] sm:$0xff]
    %v1131 = vld [vmem:[%s3 + $0x178] sm:$0xff]
    %v1132 = vld [vmem:[%s3 + $0x180] sm:$0xff]
    %v1133 = vld [vmem:[%s3 + $0x188] sm:$0xff]
    %v1134 = vld [vmem:[%s3 + $0x190] sm:$0xff]
    %v1135 = vld [vmem:[%s3 + $0x198] sm:$0xff]
    %v1136 = vld [vmem:[%s3 + $0x1a0] sm:$0xff]
    %v1137 = vld [vmem:[%s3 + $0x1a8] sm:$0xff]
    %v1138 = vld [vmem:[%s3 + $0x1b0] sm:$0xff]
    %v1139 = vld [vmem:[%s3 + $0x1b8] sm:$0xff]
    %v1140 = vld [vmem:[%s3 + $0x1c0] sm:$0xff]
    %v1141 = vld [vmem:[%s3 + $0x1c8] sm:$0xff]
    %v1142 = vld [vmem:[%s3 + $0x1d0] sm:$0xff]
    %v1143 = vld [vmem:[%s3 + $0x1d8] sm:$0xff]
    %v1144 = vld [vmem:[%s3 + $0x1e0] sm:$0xff]
    %v1145 = vld [vmem:[%s3 + $0x1e8] sm:$0xff]
    %v1146 = vld [vmem:[%s3 + $0x1f0] sm:$0xff]
    %v1147 = vld [vmem:[%s3 + $0x1f8] sm:$0xff]
    %1148 = vmatprep.subr.mxu0 0.0
    %1149 = vmatpush1.msra.mxu0 %v1084
    %1150 = vmatprep.subr.mxu0 0.0
    %1151 = vmatpush1.msra.mxu0 %v1085
    %1152 = vmatprep.subr.mxu0 0.0
    %1153 = vmatpush1.msra.mxu0 %v1086
    %1154 = vmatprep.subr.mxu0 0.0
    %1155 = vmatpush1.msra.mxu0 %v1087
    %1156 = vmatprep.subr.mxu0 0.0
    %1157 = vmatpush1.msra.mxu0 %v1088
    %1158 = vmatprep.subr.mxu0 0.0
    %1159 = vmatpush1.msra.mxu0 %v1089
    %1160 = vmatprep.subr.mxu0 0.0
    %1161 = vmatpush1.msra.mxu0 %v1090
    %1162 = vmatprep.subr.mxu0 0.0
    %1163 = vmatpush1.msra.mxu0 %v1091
    %1164 = vmatprep.subr.mxu0 0.0
    %1165 = vmatpush1.msra.mxu0 %v1092
    %1166 = vmatprep.subr.mxu0 0.0
    %1167 = vmatpush1.msra.mxu0 %v1093
    %1168 = vmatprep.subr.mxu0 0.0
    %1169 = vmatpush1.msra.mxu0 %v1094
    %1170 = vmatprep.subr.mxu0 0.0
    %1171 = vmatpush1.msra.mxu0 %v1095
    %1172 = vmatprep.subr.mxu0 0.0
    %1173 = vmatpush1.msra.mxu0 %v1096
    %1174 = vmatprep.subr.mxu0 0.0
    %1175 = vmatpush1.msra.mxu0 %v1097
    %1176 = vmatprep.subr.mxu0 0.0
    %1177 = vmatpush1.msra.mxu0 %v1098
    %1178 = vmatprep.subr.mxu0 0.0
    %1179 = vmatpush1.msra.mxu0 %v1099
    %1180 = vmatprep.subr.mxu0 0.0
    %1181 = vmatpush1.msra.mxu0 %v1100
    %1182 = vmatprep.subr.mxu0 0.0
    %1183 = vmatpush1.msra.mxu0 %v1101
    %1184 = vmatprep.subr.mxu0 0.0
    %1185 = vmatpush1.msra.mxu0 %v1102
    %1186 = vmatprep.subr.mxu0 0.0
    %1187 = vmatpush1.msra.mxu0 %v1103
    %1188 = vmatprep.subr.mxu0 0.0
    %1189 = vmatpush1.msra.mxu0 %v1104
    %1190 = vmatprep.subr.mxu0 0.0
    %1191 = vmatpush1.msra.mxu0 %v1105
    %1192 = vmatprep.subr.mxu0 0.0
    %1193 = vmatpush1.msra.mxu0 %v1106
    %1194 = vmatprep.subr.mxu0 0.0
    %1195 = vmatpush1.msra.mxu0 %v1107
    %1196 = vmatprep.subr.mxu0 0.0
    %1197 = vmatpush1.msra.mxu0 %v1108
    %1198 = vmatprep.subr.mxu0 0.0
    %1199 = vmatpush1.msra.mxu0 %v1109
    %1200 = vmatprep.subr.mxu0 0.0
    %1201 = vmatpush1.msra.mxu0 %v1110
    %1202 = vmatprep.subr.mxu0 0.0
    %1203 = vmatpush1.msra.mxu0 %v1111
    %1204 = vmatprep.subr.mxu0 0.0
    %1205 = vmatpush1.msra.mxu0 %v1112
    %1206 = vmatprep.subr.mxu0 0.0
    %1207 = vmatpush1.msra.mxu0 %v1113
    %1208 = vmatprep.subr.mxu0 0.0
    %1209 = vmatpush1.msra.mxu0 %v1114
    %1210 = vmatprep.subr.mxu0 0.0
    %1211 = vmatpush1.msra.mxu0 %v1115
    %1212 = vmatprep.mubr.f32.mxu0 %v1081
    %1213 = vmatmul.mubr.f32.gmra.mrb[0].mxu0 %v1080
    %v1214 = vpop.f32.mrb[0].mxu0
    %v1215 = vadd.f32 0.0, %v1214
    %v1216 = vpop.f32.mrb[0].mxu0
    %1217 = vdwg.mxu0
    %1218 = vmatprep.subr.mxu0 0.0
    %1219 = vmatpush1.msra.mxu0 %v1116
    %1220 = vmatprep.subr.mxu0 0.0
    %1221 = vmatpush1.msra.mxu0 %v1117
    %1222 = vmatprep.subr.mxu0 0.0
    %1223 = vmatpush1.msra.mxu0 %v1118
    %1224 = vmatprep.subr.mxu0 0.0
    %1225 = vmatpush1.msra.mxu0 %v1119
    %1226 = vmatprep.subr.mxu0 0.0
    %1227 = vmatpush1.msra.mxu0 %v1120
    %1228 = vmatprep.subr.mxu0 0.0
    %1229 = vmatpush1.msra.mxu0 %v1121
    %1230 = vmatprep.subr.mxu0 0.0
    %1231 = vmatpush1.msra.mxu0 %v1122
    %1232 = vmatprep.subr.mxu0 0.0
    %1233 = vmatpush1.msra.mxu0 %v1123
    %1234 = vmatprep.subr.mxu0 0.0
    %1235 = vmatpush1.msra.mxu0 %v1124
    %1236 = vmatprep.subr.mxu0 0.0
    %1237 = vmatpush1.msra.mxu0 %v1125
    %1238 = vmatprep.subr.mxu0 0.0
    %1239 = vmatpush1.msra.mxu0 %v1126
    %1240 = vmatprep.subr.mxu0 0.0
    %1241 = vmatpush1.msra.mxu0 %v1127
    %1242 = vmatprep.subr.mxu0 0.0
    %1243 = vmatpush1.msra.mxu0 %v1128
    %1244 = vmatprep.subr.mxu0 0.0
    %1245 = vmatpush1.msra.mxu0 %v1129
    %1246 = vmatprep.subr.mxu0 0.0
    %1247 = vmatpush1.msra.mxu0 %v1130
    %1248 = vmatprep.subr.mxu0 0.0
    %1249 = vmatpush1.msra.mxu0 %v1131
    %1250 = vmatprep.subr.mxu0 0.0
    %1251 = vmatpush1.msra.mxu0 %v1132
    %1252 = vmatprep.subr.mxu0 0.0
    %1253 = vmatpush1.msra.mxu0 %v1133
    %1254 = vmatprep.subr.mxu0 0.0
    %1255 = vmatpush1.msra.mxu0 %v1134
    %1256 = vmatprep.subr.mxu0 0.0
    %1257 = vmatpush1.msra.mxu0 %v1135
    %1258 = vmatprep.subr.mxu0 0.0
    %1259 = vmatpush1.msra.mxu0 %v1136
    %1260 = vmatprep.subr.mxu0 0.0
    %1261 = vmatpush1.msra.mxu0 %v1137
    %1262 = vmatprep.subr.mxu0 0.0
    %1263 = vmatpush1.msra.mxu0 %v1138
    %1264 = vmatprep.subr.mxu0 0.0
    %1265 = vmatpush1.msra.mxu0 %v1139
    %1266 = vmatprep.subr.mxu0 0.0
    %1267 = vmatpush1.msra.mxu0 %v1140
    %1268 = vmatprep.subr.mxu0 0.0
    %1269 = vmatpush1.msra.mxu0 %v1141
    %1270 = vmatprep.subr.mxu0 0.0
    %1271 = vmatpush1.msra.mxu0 %v1142
    %1272 = vmatprep.subr.mxu0 0.0
    %1273 = vmatpush1.msra.mxu0 %v1143
    %1274 = vmatprep.subr.mxu0 0.0
    %1275 = vmatpush1.msra.mxu0 %v1144
    %1276 = vmatprep.subr.mxu0 0.0
    %1277 = vmatpush1.msra.mxu0 %v1145
    %1278 = vmatprep.subr.mxu0 0.0
    %1279 = vmatpush1.msra.mxu0 %v1146
    %1280 = vmatprep.subr.mxu0 0.0
    %1281 = vmatpush1.msra.mxu0 %v1147
    %1282 = vmatprep.mubr.f32.mxu0 %v1083
    %1283 = vmatmul.mubr.f32.gmra.mrb[0].mxu0 %v1082
    %v1284 = vpop.f32.mrb[0].mxu0
    %v1285 = vadd.f32 %v1215, %v1284
    %v1286 = vpop.f32.mrb[0].mxu0
    %1287 = vdwg.mxu0
    %v1288 = vmul.f32 %v27, %v1005
    %v1289 = vmul.f32 %v28, %v1007
    %v1290 = vmul.f32 %v29, %v1076
    %v1291 = vmul.f32 %v30, %v1078
    %1292 = vmatprep.subr.mxu0 0.0
    %1293 = vmatpush1.msra.mxu0 %v1084
    %1294 = vmatprep.subr.mxu0 0.0
    %1295 = vmatpush1.msra.mxu0 %v1085
    %1296 = vmatprep.subr.mxu0 0.0
    %1297 = vmatpush1.msra.mxu0 %v1086
    %1298 = vmatprep.subr.mxu0 0.0
    %1299 = vmatpush1.msra.mxu0 %v1087
    %1300 = vmatprep.subr.mxu0 0.0
    %1301 = vmatpush1.msra.mxu0 %v1088
    %1302 = vmatprep.subr.mxu0 0.0
    %1303 = vmatpush1.msra.mxu0 %v1089
    %1304 = vmatprep.subr.mxu0 0.0
    %1305 = vmatpush1.msra.mxu0 %v1090
    %1306 = vmatprep.subr.mxu0 0.0
    %1307 = vmatpush1.msra.mxu0 %v1091
    %1308 = vmatprep.subr.mxu0 0.0
    %1309 = vmatpush1.msra.mxu0 %v1092
    %1310 = vmatprep.subr.mxu0 0.0
    %1311 = vmatpush1.msra.mxu0 %v1093
    %1312 = vmatprep.subr.mxu0 0.0
    %1313 = vmatpush1.msra.mxu0 %v1094
    %1314 = vmatprep.subr.mxu0 0.0
    %1315 = vmatpush1.msra.mxu0 %v1095
    %1316 = vmatprep.subr.mxu0 0.0
    %1317 = vmatpush1.msra.mxu0 %v1096
    %1318 = vmatprep.subr.mxu0 0.0
    %1319 = vmatpush1.msra.mxu0 %v1097
    %1320 = vmatprep.subr.mxu0 0.0
    %1321 = vmatpush1.msra.mxu0 %v1098
    %1322 = vmatprep.subr.mxu0 0.0
    %1323 = vmatpush1.msra.mxu0 %v1099
    %1324 = vmatprep.subr.mxu0 0.0
    %1325 = vmatpush1.msra.mxu0 %v1100
    %1326 = vmatprep.subr.mxu0 0.0
    %1327 = vmatpush1.msra.mxu0 %v1101
    %1328 = vmatprep.subr.mxu0 0.0
    %1329 = vmatpush1.msra.mxu0 %v1102
    %1330 = vmatprep.subr.mxu0 0.0
    %1331 = vmatpush1.msra.mxu0 %v1103
    %1332 = vmatprep.subr.mxu0 0.0
    %1333 = vmatpush1.msra.mxu0 %v1104
    %1334 = vmatprep.subr.mxu0 0.0
    %1335 = vmatpush1.msra.mxu0 %v1105
    %1336 = vmatprep.subr.mxu0 0.0
    %1337 = vmatpush1.msra.mxu0 %v1106
    %1338 = vmatprep.subr.mxu0 0.0
    %1339 = vmatpush1.msra.mxu0 %v1107
    %1340 = vmatprep.subr.mxu0 0.0
    %1341 = vmatpush1.msra.mxu0 %v1108
    %1342 = vmatprep.subr.mxu0 0.0
    %1343 = vmatpush1.msra.mxu0 %v1109
    %1344 = vmatprep.subr.mxu0 0.0
    %1345 = vmatpush1.msra.mxu0 %v1110
    %1346 = vmatprep.subr.mxu0 0.0
    %1347 = vmatpush1.msra.mxu0 %v1111
    %1348 = vmatprep.subr.mxu0 0.0
    %1349 = vmatpush1.msra.mxu0 %v1112
    %1350 = vmatprep.subr.mxu0 0.0
    %1351 = vmatpush1.msra.mxu0 %v1113
    %1352 = vmatprep.subr.mxu0 0.0
    %1353 = vmatpush1.msra.mxu0 %v1114
    %1354 = vmatprep.subr.mxu0 0.0
    %1355 = vmatpush1.msra.mxu0 %v1115
    %1356 = vmatprep.mubr.f32.mxu0 %v1289
    %1357 = vmatmul.mubr.f32.gmra.mrb[0].mxu0 %v1288
    %v1358 = vpop.f32.mrb[0].mxu0
    %v1359 = vadd.f32 0.0, %v1358
    %v1360 = vpop.f32.mrb[0].mxu0
    %1361 = vdwg.mxu0
    %1362 = vmatprep.subr.mxu0 0.0
    %1363 = vmatpush1.msra.mxu0 %v1116
    %1364 = vmatprep.subr.mxu0 0.0
    %1365 = vmatpush1.msra.mxu0 %v1117
    %1366 = vmatprep.subr.mxu0 0.0
    %1367 = vmatpush1.msra.mxu0 %v1118
    %1368 = vmatprep.subr.mxu0 0.0
    %1369 = vmatpush1.msra.mxu0 %v1119
    %1370 = vmatprep.subr.mxu0 0.0
    %1371 = vmatpush1.msra.mxu0 %v1120
    %1372 = vmatprep.subr.mxu0 0.0
    %1373 = vmatpush1.msra.mxu0 %v1121
    %1374 = vmatprep.subr.mxu0 0.0
    %1375 = vmatpush1.msra.mxu0 %v1122
    %1376 = vmatprep.subr.mxu0 0.0
    %1377 = vmatpush1.msra.mxu0 %v1123
    %1378 = vmatprep.subr.mxu0 0.0
    %1379 = vmatpush1.msra.mxu0 %v1124
    %1380 = vmatprep.subr.mxu0 0.0
    %1381 = vmatpush1.msra.mxu0 %v1125
    %1382 = vmatprep.subr.mxu0 0.0
    %1383 = vmatpush1.msra.mxu0 %v1126
    %1384 = vmatprep.subr.mxu0 0.0
    %1385 = vmatpush1.msra.mxu0 %v1127
    %1386 = vmatprep.subr.mxu0 0.0
    %1387 = vmatpush1.msra.mxu0 %v1128
    %1388 = vmatprep.subr.mxu0 0.0
    %1389 = vmatpush1.msra.mxu0 %v1129
    %1390 = vmatprep.subr.mxu0 0.0
    %1391 = vmatpush1.msra.mxu0 %v1130
    %1392 = vmatprep.subr.mxu0 0.0
    %1393 = vmatpush1.msra.mxu0 %v1131
    %1394 = vmatprep.subr.mxu0 0.0
    %1395 = vmatpush1.msra.mxu0 %v1132
    %1396 = vmatprep.subr.mxu0 0.0
    %1397 = vmatpush1.msra.mxu0 %v1133
    %1398 = vmatprep.subr.mxu0 0.0
    %1399 = vmatpush1.msra.mxu0 %v1134
    %1400 = vmatprep.subr.mxu0 0.0
    %1401 = vmatpush1.msra.mxu0 %v1135
    %1402 = vmatprep.subr.mxu0 0.0
    %1403 = vmatpush1.msra.mxu0 %v1136
    %1404 = vmatprep.subr.mxu0 0.0
    %1405 = vmatpush1.msra.mxu0 %v1137
    %1406 = vmatprep.subr.mxu0 0.0
    %1407 = vmatpush1.msra.mxu0 %v1138
    %1408 = vmatprep.subr.mxu0 0.0
    %1409 = vmatpush1.msra.mxu0 %v1139
    %1410 = vmatprep.subr.mxu0 0.0
    %1411 = vmatpush1.msra.mxu0 %v1140
    %1412 = vmatprep.subr.mxu0 0.0
    %1413 = vmatpush1.msra.mxu0 %v1141
    %1414 = vmatprep.subr.mxu0 0.0
    %1415 = vmatpush1.msra.mxu0 %v1142
    %1416 = vmatprep.subr.mxu0 0.0
    %1417 = vmatpush1.msra.mxu0 %v1143
    %1418 = vmatprep.subr.mxu0 0.0
    %1419 = vmatpush1.msra.mxu0 %v1144
    %1420 = vmatprep.subr.mxu0 0.0
    %1421 = vmatpush1.msra.mxu0 %v1145
    %1422 = vmatprep.subr.mxu0 0.0
    %1423 = vmatpush1.msra.mxu0 %v1146
    %1424 = vmatprep.subr.mxu0 0.0
    %1425 = vmatpush1.msra.mxu0 %v1147
    %1426 = vmatprep.mubr.f32.mxu0 %v1291
    %1427 = vmatmul.mubr.f32.gmra.mrb[0].mxu0 %v1290
    %v1428 = vpop.f32.mrb[0].mxu0
    %v1429 = vadd.f32 %v1359, %v1428
    %v1430 = vpop.f32.mrb[0].mxu0
    %1431 = vdwg.mxu0
    %v1432 = vmul.f32 %v35, %v1005
    %v1433 = vmul.f32 %v36, %v1007
    %v1434 = vmul.f32 %v37, %v1076
    %v1435 = vmul.f32 %v38, %v1078
    %1436 = vmatprep.subr.mxu0 0.0
    %1437 = vmatpush1.msra.mxu0 %v1084
    %1438 = vmatprep.subr.mxu0 0.0
    %1439 = vmatpush1.msra.mxu0 %v1085
    %1440 = vmatprep.subr.mxu0 0.0
    %1441 = vmatpush1.msra.mxu0 %v1086
    %1442 = vmatprep.subr.mxu0 0.0
    %1443 = vmatpush1.msra.mxu0 %v1087
    %1444 = vmatprep.subr.mxu0 0.0
    %1445 = vmatpush1.msra.mxu0 %v1088
    %1446 = vmatprep.subr.mxu0 0.0
    %1447 = vmatpush1.msra.mxu0 %v1089
    %1448 = vmatprep.subr.mxu0 0.0
    %1449 = vmatpush1.msra.mxu0 %v1090
    %1450 = vmatprep.subr.mxu0 0.0
    %1451 = vmatpush1.msra.mxu0 %v1091
    %1452 = vmatprep.subr.mxu0 0.0
    %1453 = vmatpush1.msra.mxu0 %v1092
    %1454 = vmatprep.subr.mxu0 0.0
    %1455 = vmatpush1.msra.mxu0 %v1093
    %1456 = vmatprep.subr.mxu0 0.0
    %1457 = vmatpush1.msra.mxu0 %v1094
    %1458 = vmatprep.subr.mxu0 0.0
    %1459 = vmatpush1.msra.mxu0 %v1095
    %1460 = vmatprep.subr.mxu0 0.0
    %1461 = vmatpush1.msra.mxu0 %v1096
    %1462 = vmatprep.subr.mxu0 0.0
    %1463 = vmatpush1.msra.mxu0 %v1097
    %1464 = vmatprep.subr.mxu0 0.0
    %1465 = vmatpush1.msra.mxu0 %v1098
    %1466 = vmatprep.subr.mxu0 0.0
    %1467 = vmatpush1.msra.mxu0 %v1099
    %1468 = vmatprep.subr.mxu0 0.0
    %1469 = vmatpush1.msra.mxu0 %v1100
    %1470 = vmatprep.subr.mxu0 0.0
    %1471 = vmatpush1.msra.mxu0 %v1101
    %1472 = vmatprep.subr.mxu0 0.0
    %1473 = vmatpush1.msra.mxu0 %v1102
    %1474 = vmatprep.subr.mxu0 0.0
    %1475 = vmatpush1.msra.mxu0 %v1103
    %1476 = vmatprep.subr.mxu0 0.0
    %1477 = vmatpush1.msra.mxu0 %v1104
    %1478 = vmatprep.subr.mxu0 0.0
    %1479 = vmatpush1.msra.mxu0 %v1105
    %1480 = vmatprep.subr.mxu0 0.0
    %1481 = vmatpush1.msra.mxu0 %v1106
    %1482 = vmatprep.subr.mxu0 0.0
    %1483 = vmatpush1.msra.mxu0 %v1107
    %1484 = vmatprep.subr.mxu0 0.0
    %1485 = vmatpush1.msra.mxu0 %v1108
    %1486 = vmatprep.subr.mxu0 0.0
    %1487 = vmatpush1.msra.mxu0 %v1109
    %1488 = vmatprep.subr.mxu0 0.0
    %1489 = vmatpush1.msra.mxu0 %v1110
    %1490 = vmatprep.subr.mxu0 0.0
    %1491 = vmatpush1.msra.mxu0 %v1111
    %1492 = vmatprep.subr.mxu0 0.0
    %1493 = vmatpush1.msra.mxu0 %v1112
    %1494 = vmatprep.subr.mxu0 0.0
    %1495 = vmatpush1.msra.mxu0 %v1113
    %1496 = vmatprep.subr.mxu0 0.0
    %1497 = vmatpush1.msra.mxu0 %v1114
    %1498 = vmatprep.subr.mxu0 0.0
    %1499 = vmatpush1.msra.mxu0 %v1115
    %1500 = vmatprep.mubr.f32.mxu0 %v1433
    %1501 = vmatmul.mubr.f32.gmra.mrb[0].mxu0 %v1432
    %v1502 = vpop.f32.mrb[0].mxu0
    %v1503 = vadd.f32 0.0, %v1502
    %v1504 = vpop.f32.mrb[0].mxu0
    %1505 = vdwg.mxu0
    %1506 = vmatprep.subr.mxu0 0.0
    %1507 = vmatpush1.msra.mxu0 %v1116
    %1508 = vmatprep.subr.mxu0 0.0
    %1509 = vmatpush1.msra.mxu0 %v1117
    %1510 = vmatprep.subr.mxu0 0.0
    %1511 = vmatpush1.msra.mxu0 %v1118
    %1512 = vmatprep.subr.mxu0 0.0
    %1513 = vmatpush1.msra.mxu0 %v1119
    %1514 = vmatprep.subr.mxu0 0.0
    %1515 = vmatpush1.msra.mxu0 %v1120
    %1516 = vmatprep.subr.mxu0 0.0
    %1517 = vmatpush1.msra.mxu0 %v1121
    %1518 = vmatprep.subr.mxu0 0.0
    %1519 = vmatpush1.msra.mxu0 %v1122
    %1520 = vmatprep.subr.mxu0 0.0
    %1521 = vmatpush1.msra.mxu0 %v1123
    %1522 = vmatprep.subr.mxu0 0.0
    %1523 = vmatpush1.msra.mxu0 %v1124
    %1524 = vmatprep.subr.mxu0 0.0
    %1525 = vmatpush1.msra.mxu0 %v1125
    %1526 = vmatprep.subr.mxu0 0.0
    %1527 = vmatpush1.msra.mxu0 %v1126
    %1528 = vmatprep.subr.mxu0 0.0
    %1529 = vmatpush1.msra.mxu0 %v1127
    %1530 = vmatprep.subr.mxu0 0.0
    %1531 = vmatpush1.msra.mxu0 %v1128
    %1532 = vmatprep.subr.mxu0 0.0
    %1533 = vmatpush1.msra.mxu0 %v1129
    %1534 = vmatprep.subr.mxu0 0.0
    %1535 = vmatpush1.msra.mxu0 %v1130
    %1536 = vmatprep.subr.mxu0 0.0
    %1537 = vmatpush1.msra.mxu0 %v1131
    %1538 = vmatprep.subr.mxu0 0.0
    %1539 = vmatpush1.msra.mxu0 %v1132
    %1540 = vmatprep.subr.mxu0 0.0
    %1541 = vmatpush1.msra.mxu0 %v1133
    %1542 = vmatprep.subr.mxu0 0.0
    %1543 = vmatpush1.msra.mxu0 %v1134
    %1544 = vmatprep.subr.mxu0 0.0
    %1545 = vmatpush1.msra.mxu0 %v1135
    %1546 = vmatprep.subr.mxu0 0.0
    %1547 = vmatpush1.msra.mxu0 %v1136
    %1548 = vmatprep.subr.mxu0 0.0
    %1549 = vmatpush1.msra.mxu0 %v1137
    %1550 = vmatprep.subr.mxu0 0.0
    %1551 = vmatpush1.msra.mxu0 %v1138
    %1552 = vmatprep.subr.mxu0 0.0
    %1553 = vmatpush1.msra.mxu0 %v1139
    %1554 = vmatprep.subr.mxu0 0.0
    %1555 = vmatpush1.msra.mxu0 %v1140
    %1556 = vmatprep.subr.mxu0 0.0
    %1557 = vmatpush1.msra.mxu0 %v1141
    %1558 = vmatprep.subr.mxu0 0.0
    %1559 = vmatpush1.msra.mxu0 %v1142
    %1560 = vmatprep.subr.mxu0 0.0
    %1561 = vmatpush1.msra.mxu0 %v1143
    %1562 = vmatprep.subr.mxu0 0.0
    %1563 = vmatpush1.msra.mxu0 %v1144
    %1564 = vmatprep.subr.mxu0 0.0
    %1565 = vmatpush1.msra.mxu0 %v1145
    %1566 = vmatprep.subr.mxu0 0.0
    %1567 = vmatpush1.msra.mxu0 %v1146
    %1568 = vmatprep.subr.mxu0 0.0
    %1569 = vmatpush1.msra.mxu0 %v1147
    %1570 = vmatprep.mubr.f32.mxu0 %v1435
    %1571 = vmatmul.mubr.f32.gmra.mrb[0].mxu0 %v1434
    %v1572 = vpop.f32.mrb[0].mxu0
    %v1573 = vadd.f32 %v1503, %v1572
    %v1574 = vpop.f32.mrb[0].mxu0
    %1575 = vdwg.mxu0
    %1577 = vrot.lane.b32.xlu0 %v1429, 32
    %v1578 = vpop.permute.xlu0 %1577
    %1581 = vrot.lane.b32.xlu0 %v1573, 64
    %v1582 = vpop.permute.xlu0 %1581
    %vm1584 = vcmask 261120
    %v1585 = vsel %vm1584, %v1285, %v1578
    %vm1586 = vcmask 523264
    %v1587 = vsel %vm1586, %v1585, %v1582
    %vm1588 = vcmask 785408
    %1589 = vst.msk [vmem:[#allocation3] sm:$0xff] %vm1588, %v1587
    // Predicated region
    $region22: #{tpu_custom_call.1} parent=1 // pred_check
      _
    $region23: #{tpu_custom_call.1} parent=1 // pred_check_branch
      %1591 = sbr.rel (0) target = $region25
    $region24: #{tpu_custom_call.1} parent=1 // pred_region
      %s1593 = ssub.s32 128, 128
      %1594 = vsyncadd [#allocation4], %s1593
      %s1596 = sshll.u32 [#allocation3], 4
      %s1597 = int_to_ptr.vmem [resolvable:$true] %s1596
      %1599 = dma.vmem_to_hbm [thread:$0]  %s1597, 128, %s5, [#allocation4]
    $region25: #{tpu_custom_call.1} parent=1 // pred_fallthru
      _
    // Predicated region
    $region26: #{tpu_custom_call.1} parent=1 // pred_check
      _
    $region27: #{tpu_custom_call.1} parent=1 // pred_check_branch
      %1601 = sbr.rel (0) target = $region29
    $region28: #{tpu_custom_call.1} parent=1 // pred_region
      %1602 = dma.done [#allocation4], 128
    $region29: #{tpu_custom_call.1} parent=1 // pred_fallthru
      _
    %1603 = vsyncpa [#allocation4], 1

</llo_original>
